<compile_context>
chip_gen: v5e
topology: v5e:2x2
jax: 0.10.0
libtpu: 0.0.40
codegen_flags: <defaults>
</compile_context>

<pallas_src>
import functools

import jax
import jax.numpy as jnp
from jax.experimental import pallas as pl
from jax.experimental.pallas import tpu as pltpu

# ----------------------------- canvas geometry ------------------------------
H_IMG = 16
W_IMG = 16
WP = W_IMG + 2            # 18: two zero columns on the right act as the horizontal halo
HP = 20                   # >= H_IMG + 2 and HP*WP is a multiple of 8
P_FLAT = HP * WP          # 360 flattened spatial positions per image
E_PAD = 24                # zero rows pre/appended inside the kernel (>= WP + 1)

# flattened-canvas row shifts of the 9 taps of a 3x3 'same' conv
_SHIFTS3 = tuple((kh - 1) * WP + (kw - 1) for kh in range(3) for kw in range(3))

INNER_PLAN = ("trip",) * 5 + ("c1relu", "c1")   # 5 triplets, conv6 (ReLU), conv7
BACKBONE_PLAN = ("c3",)


# ------------------------------ Pallas kernel -------------------------------
def _conv_layer(x, w_ref, b_ref, ksize, relu, mask):
    """x: (P_FLAT, Cin) bf16 canvas value -> (P_FLAT, Cout) bf16 canvas value."""
    w = w_ref[...]                      # (Cin, Cout) or (9*Cin, Cout), bf16
    b = b_ref[...]                      # (1, Cout), f32 (folded BN bias)
    if ksize == 3:
        cin = x.shape[-1]
        zpad = jnp.zeros((E_PAD, cin), x.dtype)
        xz = jnp.concatenate([zpad, x, zpad], axis=0)          # (P_FLAT + 2*E_PAD, Cin)
        taps = [xz[E_PAD + s: E_PAD + s + P_FLAT, :] for s in _SHIFTS3]
        xin = jnp.concatenate(taps, axis=-1)                   # (P_FLAT, 9*Cin)
    else:
        xin = x
    y = jnp.dot(xin, w, preferred_element_type=jnp.float32) + b
    if relu:
        y = jnp.maximum(y, 0.0)
    y = y * mask          # re-zero the spatial halo so it keeps acting as 'same' padding
    return y.astype(jnp.bfloat16)


def _fused_kernel(*refs, plan, n_params):
    # refs = [x_canvas, mask, w0, b0, w1, b1, ..., out]
    x_ref, mask_ref = refs[0], refs[1]
    params = refs[2:2 + n_params]
    out_ref = refs[2 + n_params]

    mask = mask_ref[...]                # (P_FLAT, 1) f32, 1.0 at valid pixels
    x = x_ref[0]                        # (P_FLAT, Cin) bf16
    pi = 0
    for op in plan:
        if op == "trip":                # conv_triplet: 3 convs + channel concat (in VMEM)
            ys = []
            cur = x
            for _ in range(3):
                cur = _conv_layer(cur, params[pi], params[pi + 1], 3, True, mask)
                pi += 2
                ys.append(cur)
            x = jnp.concatenate(ys, axis=-1)
        elif op == "c3":                # 3x3 conv + BN + ReLU (backbone stand-in)
            x = _conv_layer(x, params[pi], params[pi + 1], 3, True, mask)
            pi += 2
        elif op == "c1relu":            # conv6: 1x1 + BN + ReLU
            x = _conv_layer(x, params[pi], params[pi + 1], 1, True, mask)
            pi += 2
        else:                           # "c1": conv7: 1x1 + BN, no ReLU
            x = _conv_layer(x, params[pi], params[pi + 1], 1, False, mask)
            pi += 2
    out_ref[0] = x


def _const_spec(shape):
    zeros = (0,) * len(shape)
    return pl.BlockSpec(shape, lambda n, _z=zeros: _z)


@functools.partial(jax.jit, static_argnames=("plan",))
def _fused_stage(x_canvas, mask, flat_params, *, plan):
    n, p_flat, cin = x_canvas.shape
    n_params = len(flat_params)
    cout = flat_params[-2].shape[-1]     # last layer's (padded) output width

    in_specs = [pl.BlockSpec((1, p_flat, cin), lambda i: (i, 0, 0)),
                _const_spec(mask.shape)]
    in_specs += [_const_spec(a.shape) for a in flat_params]
    out_spec = pl.BlockSpec((1, p_flat, cout), lambda i: (i, 0, 0))

    kernel = functools.partial(_fused_kernel, plan=plan, n_params=n_params)
    return pl.pallas_call(
        kernel,
        out_shape=jax.ShapeDtypeStruct((n, p_flat, cout), jnp.bfloat16),
        grid=(n,),
        in_specs=in_specs,
        out_specs=out_spec,
        compiler_params=pltpu.CompilerParams(
            dimension_semantics=("parallel",),
            vmem_limit_bytes=48 << 20,
        ),
    )(x_canvas, mask, *flat_params)


# --------------------------- canvas <-> NCHW glue ---------------------------
def _make_mask():
    valid = (jnp.arange(HP) < H_IMG)[:, None] & (jnp.arange(WP) < W_IMG)[None, :]
    return valid.reshape(P_FLAT, 1).astype(jnp.float32)


def to_canvas(x_nhwc):
    n, h, w, c = x_nhwc.shape
    xp = jnp.pad(x_nhwc, ((0, 0), (0, HP - h), (0, WP - w), (0, 0)))
    return xp.reshape(n, P_FLAT, c).astype(jnp.bfloat16)


def from_canvas(c, c_real):
    n = c.shape[0]
    x = c.reshape(n, HP, WP, -1)[:, :H_IMG, :W_IMG, :c_real]
    return jnp.transpose(x, (0, 3, 1, 2)).astype(jnp.float32)


# ------------------- deterministic synthetic initialization -----------------
class KeyGen:
    def __init__(self, seed=0):
        self.key = jax.random.PRNGKey(seed)

    def next(self):
        self.key, sub = jax.random.split(self.key)
        return sub


def init_conv_block(key, cin, cout, k):
    kw_key, kb_key = jax.random.split(key)
    fan_in = cin * k * k
    std = (2.0 / fan_in) ** 0.5
    w = jax.random.normal(kw_key, (k * k, cin, cout), jnp.float32) * std
    conv_b = jax.random.normal(kb_key, (cout,), jnp.float32) * 0.01
    gamma = jnp.ones((cout,), jnp.float32)
    beta = jnp.zeros((cout,), jnp.float32)
    running_mean = jnp.zeros((cout,), jnp.float32)
    running_var = jnp.ones((cout,), jnp.float32)
    eps = 1e-5
    scale = gamma / jnp.sqrt(running_var + eps)        # folded BN scale
    bias = beta + (conv_b - running_mean) * scale      # folded BN bias
    return dict(w=w, scale=scale, bias=bias)


def init_triplet(kg, cin, cdiv):
    return [init_conv_block(kg.next(), cin, cdiv, 3),
            init_conv_block(kg.next(), cdiv, cdiv, 3),
            init_conv_block(kg.next(), cdiv, cdiv, 3)]


def init_inner(kg, cin, cdiv, conv6, conv7):
    return {
        't1': init_triplet(kg, cin, cdiv),
        't2': init_triplet(kg, 3 * cdiv, cdiv),
        't3': init_triplet(kg, 3 * cdiv, cdiv),
        't4': init_triplet(kg, 3 * cdiv, cdiv),
        't5': init_triplet(kg, 3 * cdiv, cdiv),
        'c6': init_conv_block(kg.next(), conv6[0], conv6[1], 1),
        'c7': init_conv_block(kg.next(), conv7[0], conv7[1], 1),
    }


def openpose_init(kg, in_channels):
    return {
        # TODO(synk): backbone.vgg is not provided in the reference; a single
        # conv_block(in_channels -> 128, 3x3, same) stand-in produces the 128
        # feature channels that the paf0 stage expects.
        'backbone': init_conv_block(kg.next(), in_channels, 128, 3),
        'paf0': init_inner(kg, 128, 96, (288, 256), (256, 52)),
        'paf1': init_inner(kg, 180, 128, (384, 512), (512, 52)),
        'paf2': init_inner(kg, 180, 128, (384, 512), (512, 52)),
        'paf3': init_inner(kg, 180, 128, (384, 512), (512, 52)),
        'htmp0': init_inner(kg, 180, 96, (288, 256), (256, 26)),
        'htmp1': init_inner(kg, 206, 128, (384, 512), (512, 26)),
    }


# --------------------------- parameter packing ------------------------------
# Stage inputs are concatenations of 128-channel canvases; the first conv of
# each stage gets its real input channels scattered into that padded layout.
SEG_F_PAF = ((0, 128), (128, 52))                    # [F(128), prev PAF(52)]
SEG_F_PAF_HTMP = ((0, 128), (128, 52), (256, 26))    # [F(128), PAFS(52), htmp0(26)]


def _pack_block(blk, cin_segments=None, cin_pad=None, cout_pad=None):
    """Fold BN scale into the conv weight; emit (w_flat bf16, bias f32)."""
    w = blk['w'] * blk['scale'][None, None, :]         # (k*k, cin, cout)
    b = blk['bias']                                    # (cout,)
    kk, cin, cout = w.shape
    if cout_pad is not None and cout_pad > cout:       # lane-dense head output
        w = jnp.pad(w, ((0, 0), (0, 0), (0, cout_pad - cout)))
        b = jnp.pad(b, (0, cout_pad - cout))
    if cin_segments is not None:                       # scatter real cin into padded cin
        wn = jnp.zeros((kk, cin_pad, w.shape[-1]), w.dtype)
        src = 0
        for dst, length in cin_segments:
            wn = wn.at[:, dst:dst + length, :].set(w[:, src:src + length, :])
            src += length
        w = wn
    kk, cin_eff, co = w.shape
    return (w.reshape(kk * cin_eff, co).astype(jnp.bfloat16),
            b.reshape(1, -1).astype(jnp.float32))


def _pack_inner(p, first_segments=None, first_cin_pad=None):
    flat = []
    for ti, tname in enumerate(('t1', 't2', 't3', 't4', 't5')):
        for j, blk in enumerate(p[tname]):
            if ti == 0 and j == 0 and first_segments is not None:
                flat += list(_pack_block(blk, first_segments, first_cin_pad))
            else:
                flat += list(_pack_block(blk))
    flat += list(_pack_block(p['c6']))
    flat += list(_pack_block(p['c7'], cout_pad=128))
    return tuple(flat)


def pack_all(params):
    return {
        'backbone': _pack_block(params['backbone']),
        'paf0': _pack_inner(params['paf0']),
        'paf1': _pack_inner(params['paf1'], SEG_F_PAF, 256),
        'paf2': _pack_inner(params['paf2'], SEG_F_PAF, 256),
        'paf3': _pack_inner(params['paf3'], SEG_F_PAF, 256),
        'htmp0': _pack_inner(params['htmp0'], SEG_F_PAF, 256),
        'htmp1': _pack_inner(params['htmp1'], SEG_F_PAF_HTMP, 384),
    }


# ------------------------------ forward pass --------------------------------
def openpose_apply(x_nchw, packed):
    mask = _make_mask()
    x = jnp.transpose(x_nchw, (0, 2, 3, 1)).astype(jnp.float32)   # NCHW -> NHWC
    xc = to_canvas(x)

    F_c = _fused_stage(xc, mask, packed['backbone'], plan=BACKBONE_PLAN)   # 128 ch

    save_pafs_c = []
    c = _fused_stage(F_c, mask, packed['paf0'], plan=INNER_PLAN)           # 52 (pad 128)
    save_pafs_c.append(c)
    for name in ('paf1', 'paf2', 'paf3'):
        xin = jnp.concatenate([F_c, c], axis=-1)                           # F + prev PAFs
        c = _fused_stage(xin, mask, packed[name], plan=INNER_PLAN)
        save_pafs_c.append(c)
    pafs_c = c

    xin = jnp.concatenate([F_c, pafs_c], axis=-1)
    h_c = _fused_stage(xin, mask, packed['htmp0'], plan=INNER_PLAN)        # 26 (pad 128)
    save_htmps_c = [h_c]
    xin = jnp.concatenate([F_c, pafs_c, h_c], axis=-1)
    h_c = _fused_stage(xin, mask, packed['htmp1'], plan=INNER_PLAN)
    save_htmps_c.append(h_c)
    heat_c = h_c

    out = jnp.concatenate([from_canvas(pafs_c, 52), from_canvas(heat_c, 26)], axis=1)
    save_pafs = [from_canvas(a, 52) for a in save_pafs_c]
    save_htmps = [from_canvas(a, 26) for a in save_htmps_c]
    return out, save_pafs, save_htmps


# -----------------------------------------------------------------------------
if __name__ == "__main__":
    kg = KeyGen(seed=0)
    in_channels = 3
    params = openpose_init(kg, in_channels)
    packed = pack_all(params)

    x = jax.random.normal(jax.random.PRNGKey(0), (2, in_channels, 16, 16),
                          jnp.float32)  # NCHW, like the torch module

    out, pafs_list, htmps_list = openpose_apply(x, packed)
    out = jax.block_until_ready(out)
    for a in pafs_list + htmps_list:
        jax.block_until_ready(a)

    assert out.shape == (2, 78, 16, 16), out.shape
    assert all(a.shape == (2, 52, 16, 16) for a in pafs_list)
    assert all(a.shape == (2, 26, 16, 16) for a in htmps_list)
    assert bool(jnp.all(jnp.isfinite(out)))

    print("KERNEL_OK")
</pallas_src>

<mosaic_0001>
module attributes {stable_mosaic.version = 11 : i64} {
  func.func @_fused_kernel(%arg0: i32, %arg1: memref<1x360x3xbf16, #tpu.memory_space<vmem>>, %arg2: memref<360x1xf32, #tpu.memory_space<vmem>>, %arg3: memref<27x128xbf16, #tpu.memory_space<vmem>>, %arg4: memref<1x128xf32, #tpu.memory_space<vmem>>, %arg5: memref<1x360x128xbf16, #tpu.memory_space<vmem>>) attributes {dimension_semantics = [#tpu.dimension_semantics<parallel>], iteration_bounds = array<i64: 2>, scalar_prefetch = 0 : i64, scratch_operands = 0 : i64, tpu.core_type = #tpu.core_type<tc>, window_params = [{transform_indices = @transform_0, window_bounds = array<i64: 1, 360, 3>}, {pipeline_mode = #tpu.pipeline_mode<synchronous>, transform_indices = @transform_1, window_bounds = array<i64: 360, 1>}, {pipeline_mode = #tpu.pipeline_mode<synchronous>, transform_indices = @transform_2, window_bounds = array<i64: 27, 128>}, {pipeline_mode = #tpu.pipeline_mode<synchronous>, transform_indices = @transform_3, window_bounds = array<i64: 1, 128>}, {transform_indices = @transform_4, window_bounds = array<i64: 1, 360, 128>}]} {
    %c0 = arith.constant 0 : index
    %c0_0 = arith.constant 0 : index
    %0 = vector.load %arg2[%c0, %c0_0] : memref<360x1xf32, #tpu.memory_space<vmem>>, vector<360x1xf32>
    %c0_1 = arith.constant 0 : index
    %c0_2 = arith.constant 0 : index
    %c0_3 = arith.constant 0 : index
    %1 = vector.load %arg1[%c0_1, %c0_2, %c0_3] : memref<1x360x3xbf16, #tpu.memory_space<vmem>>, vector<1x360x3xbf16>
    %2 = vector.shape_cast %1 : vector<1x360x3xbf16> to vector<360x3xbf16>
    %c0_4 = arith.constant 0 : index
    %c0_5 = arith.constant 0 : index
    %3 = vector.load %arg3[%c0_4, %c0_5] : memref<27x128xbf16, #tpu.memory_space<vmem>>, vector<27x128xbf16>
    %c0_6 = arith.constant 0 : index
    %c0_7 = arith.constant 0 : index
    %4 = vector.load %arg4[%c0_6, %c0_7] : memref<1x128xf32, #tpu.memory_space<vmem>>, vector<1x128xf32>
    %cst = arith.constant 0.000000e+00 : bf16
    %5 = vector.broadcast %cst : bf16 to vector<24x3xbf16>
    %6 = tpu.concatenate %5, %2, %5 in 0 : vector<24x3xbf16>, vector<360x3xbf16>, vector<24x3xbf16> -> vector<408x3xbf16>
    %7 = vector.extract_strided_slice %6 {offsets = [5, 0], sizes = [360, 3], strides = [1, 1]} : vector<408x3xbf16> to vector<360x3xbf16>
    %8 = vector.extract_strided_slice %6 {offsets = [6, 0], sizes = [360, 3], strides = [1, 1]} : vector<408x3xbf16> to vector<360x3xbf16>
    %9 = vector.extract_strided_slice %6 {offsets = [7, 0], sizes = [360, 3], strides = [1, 1]} : vector<408x3xbf16> to vector<360x3xbf16>
    %10 = vector.extract_strided_slice %6 {offsets = [23, 0], sizes = [360, 3], strides = [1, 1]} : vector<408x3xbf16> to vector<360x3xbf16>
    %11 = vector.extract_strided_slice %6 {offsets = [24, 0], sizes = [360, 3], strides = [1, 1]} : vector<408x3xbf16> to vector<360x3xbf16>
    %12 = vector.extract_strided_slice %6 {offsets = [25, 0], sizes = [360, 3], strides = [1, 1]} : vector<408x3xbf16> to vector<360x3xbf16>
    %13 = vector.extract_strided_slice %6 {offsets = [41, 0], sizes = [360, 3], strides = [1, 1]} : vector<408x3xbf16> to vector<360x3xbf16>
    %14 = vector.extract_strided_slice %6 {offsets = [42, 0], sizes = [360, 3], strides = [1, 1]} : vector<408x3xbf16> to vector<360x3xbf16>
    %15 = vector.extract_strided_slice %6 {offsets = [43, 0], sizes = [360, 3], strides = [1, 1]} : vector<408x3xbf16> to vector<360x3xbf16>
    %16 = tpu.concatenate %7, %8, %9, %10, %11, %12, %13, %14, %15 in 1 : vector<360x3xbf16>, vector<360x3xbf16>, vector<360x3xbf16>, vector<360x3xbf16>, vector<360x3xbf16>, vector<360x3xbf16>, vector<360x3xbf16>, vector<360x3xbf16>, vector<360x3xbf16> -> vector<360x27xbf16>
    %cst_8 = arith.constant dense<0.000000e+00> : vector<360x128xf32>
    %17 = tpu.matmul %16, %3, %cst_8 {dimension_numbers = #tpu.dot_dimension_numbers<[1], [0], [0], [1], [0, 0, 1, 1], [], []>} : vector<360x27xbf16>, vector<27x128xbf16>, vector<360x128xf32> -> vector<360x128xf32>
    %18 = vector.broadcast %4 : vector<1x128xf32> to vector<360x128xf32>
    %19 = arith.addf %17, %18 : vector<360x128xf32>
    %cst_9 = arith.constant 0.000000e+00 : f32
    %20 = vector.broadcast %cst_9 : f32 to vector<360x128xf32>
    %21 = arith.maximumf %19, %20 : vector<360x128xf32>
    %22 = vector.broadcast %0 : vector<360x1xf32> to vector<360x128xf32>
    %23 = arith.mulf %21, %22 : vector<360x128xf32>
    %24 = arith.truncf %23 : vector<360x128xf32> to vector<360x128xbf16>
    %c0_10 = arith.constant 0 : index
    %c0_11 = arith.constant 0 : index
    %c0_12 = arith.constant 0 : index
    %25 = vector.load %arg5[%c0_10, %c0_11, %c0_12] : memref<1x360x128xbf16, #tpu.memory_space<vmem>>, vector<1x360x128xbf16>
    %26 = vector.shape_cast %25 : vector<1x360x128xbf16> to vector<360x128xbf16>
    %27 = vector.shape_cast %24 : vector<360x128xbf16> to vector<1x360x128xbf16>
    tpu.vector_store %arg5[%c0_10, %c0_11, %c0_12], %27 {strides = array<i32>} : memref<1x360x128xbf16, #tpu.memory_space<vmem>>, vector<1x360x128xbf16>,
    return
  }
  func.func @transform_0(%arg0: i32) -> (i32, i32, i32) {
    %c0_i32 = arith.constant 0 : i32
    %c0_i32_0 = arith.constant 0 : i32
    %c0_i32_1 = arith.constant 0 : i32
    return %arg0, %c0_i32, %c0_i32_0 : i32, i32, i32
  }
  func.func @transform_1(%arg0: i32) -> (i32, i32) {
    %c0_i32 = arith.constant 0 : i32
    %c0_i32_0 = arith.constant 0 : i32
    %c0_i32_1 = arith.constant 0 : i32
    return %c0_i32, %c0_i32_0 : i32, i32
  }
  func.func @transform_2(%arg0: i32) -> (i32, i32) {
    %c0_i32 = arith.constant 0 : i32
    %c0_i32_0 = arith.constant 0 : i32
    %c0_i32_1 = arith.constant 0 : i32
    return %c0_i32, %c0_i32_0 : i32, i32
  }
  func.func @transform_3(%arg0: i32) -> (i32, i32) {
    %c0_i32 = arith.constant 0 : i32
    %c0_i32_0 = arith.constant 0 : i32
    %c0_i32_1 = arith.constant 0 : i32
    return %c0_i32, %c0_i32_0 : i32, i32
  }
  func.func @transform_4(%arg0: i32) -> (i32, i32, i32) {
    %c0_i32 = arith.constant 0 : i32
    %c0_i32_0 = arith.constant 0 : i32
    %c0_i32_1 = arith.constant 0 : i32
    return %arg0, %c0_i32, %c0_i32_0 : i32, i32, i32
  }
}

</mosaic_0001>

<llo_original>
// kernel: _fused_stage.1
$region0: #{_fused_stage.1}
  #allocation0 [shape = 'u32[]', space=smem, size = 0x4, offset = 0x4, fixed_abs, tag = 'smem constant byte address 0x4 - core index']
  #allocation1 [shape = 'u32[72,128]{1,0:T(1,128)}', space=vmem, size = 0x9000, scoped, tag = 'internal scratch']
  %s0 = inlined_call_operand.vmem [shape: bf16[2,360,3], index: 0, kind: input, shape index: {}]
  %s1 = inlined_call_operand.vmem [shape: f32[360,1], index: 1, kind: input, shape index: {}]
  %s2 = inlined_call_operand.vmem [shape: bf16[27,128], index: 2, kind: input, shape index: {}]
  %s3 = inlined_call_operand.vmem [shape: f32[1,128], index: 3, kind: input, shape index: {}]
  %s4 = inlined_call_operand.hbm [shape: bf16[2,360,128], index: 4, kind: output, shape index: {}]
  %s5 = sld [smem:[#allocation0]]
  $region49: #{_fused_stage.1} parent=0
    _
  %s7 = ssub.s32 1, %s5
  %s8 = scalar_select 0, %s7, %s5
  $region1: #{_fused_stage.1} parent=0
    #allocation2 [shape = 'u8[184320]{0}', space=vmem, size = 0x2d000, scoped, tag = 'output window, operand 0']
    #allocation3 [shape = 's32[2]{0}', space=sflag, size = 0x8, scoped, tag = 'scoped memory for _fused_stage.1']
    %9 = vsyncpa [#allocation3], 0
    %s10 = scalar_lea.sflag [#allocation3], 1
    %11 = vsyncpa %s10, 0
    loop: start=0, step=1, limit=4
    $region2: #{_fused_stage.1} parent=1 // loop_pre_header
      _
    $region3: #{_fused_stage.1} parent=1 // loop_header
      %s13 = sphi 0, %s17
      %p14 = scmp.ge.s32.totalorder %s13, 4
      %s23 = sphi 0, %s25
      %s26 = sphi 0, %s23
      %s27 = sphi 0, %s26
      %s43 = sphi 0, %s27
      %s47 = sphi 0, %s47
      %s49 = sphi 0, %s47
      %s50 = sphi 0, %s49
      %s64 = sphi 0, %s50
      %s68 = sphi 0, %s68
      %s70 = sphi 0, %s68
      %s71 = sphi 0, %s70
      %s85 = sphi 0, %s71
      %s89 = sphi 0, %s89
      %s91 = sphi 0, %s89
      %s92 = sphi 0, %s91
      %s106 = sphi 0, %s92
      %s112 = sphi 0, %s114
      %s115 = sphi 0, %s112
      %s116 = sphi 0, %s115
      %s132 = sphi 0, %s116
    $region4: #{_fused_stage.1} parent=1 // loop_header_branch
      %16 = sbr.rel (%p14) target = $region8
    $region5: #{_fused_stage.1} parent=1 // loop_body
      %s18 = ssub.s32 %s13, 1
      %s19 = ssub.s32 %s13, 2
      %s20 = sadd.s32 %s13, 1
      %s21 = ssub.s32 %s13, %s20
      %p22 = scmp.eq.s32.totalorder %s21, 0
      %s24 = sadd.s32 %s23, 1
      %s25 = scalar_select %p22, %s23, %s24
      %p28 = pneg %p22
      %p29 = scmp.eq.s32.totalorder %s13, 1
      %p30 = por %p28, %p29
      %p31 = scmp.ne.s32.totalorder %s23, %s26
      %p32 = scmp.eq.s32.totalorder %s13, 0
      %p33 = por %p31, %p32
      %p34 = scmp.ne.s32.totalorder %s23, %s26
      %p35 = scmp.eq.s32.totalorder %s18, 1
      %p36 = por %p34, %p35
      %p37 = scmp.ne.s32.totalorder %s26, %s27
      %p38 = scmp.eq.s32.totalorder %s18, 0
      %p39 = por %p37, %p38
      %p40 = scmp.ne.s32.totalorder %s26, %s27
      %p41 = scmp.eq.s32.totalorder %s19, 1
      %p42 = por %p40, %p41
      %p44 = scmp.ne.s32.totalorder %s27, %s43
      %p45 = scmp.eq.s32.totalorder %s19, 0
      %p46 = por %p44, %p45
      %s48 = sadd.s32 %s47, 1
      %p51 = scmp.eq.s32.totalorder %s13, 1
      %p52 = scmp.ne.s32.totalorder %s47, %s49
      %p53 = scmp.eq.s32.totalorder %s13, 0
      %p54 = por %p52, %p53
      %p55 = scmp.ne.s32.totalorder %s47, %s49
      %p56 = scmp.eq.s32.totalorder %s18, 1
      %p57 = por %p55, %p56
      %p58 = scmp.ne.s32.totalorder %s49, %s50
      %p59 = scmp.eq.s32.totalorder %s18, 0
      %p60 = por %p58, %p59
      %p61 = scmp.ne.s32.totalorder %s49, %s50
      %p62 = scmp.eq.s32.totalorder %s19, 1
      %p63 = por %p61, %p62
      %p65 = scmp.ne.s32.totalorder %s50, %s64
      %p66 = scmp.eq.s32.totalorder %s19, 0
      %p67 = por %p65, %p66
      %s69 = sadd.s32 %s68, 1
      %p72 = scmp.eq.s32.totalorder %s13, 1
      %p73 = scmp.ne.s32.totalorder %s68, %s70
      %p74 = scmp.eq.s32.totalorder %s13, 0
      %p75 = por %p73, %p74
      %p76 = scmp.ne.s32.totalorder %s68, %s70
      %p77 = scmp.eq.s32.totalorder %s18, 1
      %p78 = por %p76, %p77
      %p79 = scmp.ne.s32.totalorder %s70, %s71
      %p80 = scmp.eq.s32.totalorder %s18, 0
      %p81 = por %p79, %p80
      %p82 = scmp.ne.s32.totalorder %s70, %s71
      %p83 = scmp.eq.s32.totalorder %s19, 1
      %p84 = por %p82, %p83
      %p86 = scmp.ne.s32.totalorder %s71, %s85
      %p87 = scmp.eq.s32.totalorder %s19, 0
      %p88 = por %p86, %p87
      %s90 = sadd.s32 %s89, 1
      %p93 = scmp.eq.s32.totalorder %s13, 1
      %p94 = scmp.ne.s32.totalorder %s89, %s91
      %p95 = scmp.eq.s32.totalorder %s13, 0
      %p96 = por %p94, %p95
      %p97 = scmp.ne.s32.totalorder %s89, %s91
      %p98 = scmp.eq.s32.totalorder %s18, 1
      %p99 = por %p97, %p98
      %p100 = scmp.ne.s32.totalorder %s91, %s92
      %p101 = scmp.eq.s32.totalorder %s18, 0
      %p102 = por %p100, %p101
      %p103 = scmp.ne.s32.totalorder %s91, %s92
      %p104 = scmp.eq.s32.totalorder %s19, 1
      %p105 = por %p103, %p104
      %p107 = scmp.ne.s32.totalorder %s92, %s106
      %p108 = scmp.eq.s32.totalorder %s19, 0
      %p109 = por %p107, %p108
      %s110 = ssub.s32 %s13, %s20
      %p111 = scmp.eq.s32.totalorder %s110, 0
      %s113 = sadd.s32 %s112, 1
      %s114 = scalar_select %p111, %s112, %s113
      %p117 = pneg %p111
      %p118 = scmp.eq.s32.totalorder %s13, 1
      %p119 = por %p117, %p118
      %p120 = scmp.ne.s32.totalorder %s112, %s115
      %p121 = scmp.eq.s32.totalorder %s13, 0
      %p122 = por %p120, %p121
      %p123 = scmp.ne.s32.totalorder %s112, %s115
      %p124 = scmp.eq.s32.totalorder %s18, 1
      %p125 = por %p123, %p124
      %p126 = scmp.ne.s32.totalorder %s115, %s116
      %p127 = scmp.eq.s32.totalorder %s18, 0
      %p128 = por %p126, %p127
      %p129 = scmp.ne.s32.totalorder %s115, %s116
      %p130 = scmp.eq.s32.totalorder %s19, 1
      %p131 = por %p129, %p130
      %p133 = scmp.ne.s32.totalorder %s116, %s132
      %p134 = scmp.eq.s32.totalorder %s19, 0
      %p135 = por %p133, %p134
      %p136 = scmp.le.s32.totalorder 1, %s13
      %p137 = scmp.lt.s32.totalorder %s13, 3
      %p138 = pnand %p136, %p137
      %p139 = pneg %p138
      // Predicated region
      $region9: #{_fused_stage.1} parent=5 // pred_check
        _
      $region10: #{_fused_stage.1} parent=5 // pred_check_branch
        %141 = sbr.rel (%p138) target = $region12
      $region11: #{_fused_stage.1} parent=5 // pred_region
        %s142 = ssub.s32 %s13, 1
        // Predicated region
        $region13: #{_fused_stage.1} parent=11 // pred_check
          %p143 = pneg %p60
        $region14: #{_fused_stage.1} parent=11 // pred_check_branch
          %145 = sbr.rel (%p143) target = $region16
        $region15: #{_fused_stage.1} parent=11 // pred_region
          _
        $region16: #{_fused_stage.1} parent=11 // pred_fallthru
          _
        // Predicated region
        $region17: #{_fused_stage.1} parent=11 // pred_check
          %p146 = pneg %p81
        $region18: #{_fused_stage.1} parent=11 // pred_check_branch
          %148 = sbr.rel (%p146) target = $region20
        $region19: #{_fused_stage.1} parent=11 // pred_region
          _
        $region20: #{_fused_stage.1} parent=11 // pred_fallthru
          _
        // Predicated region
        $region21: #{_fused_stage.1} parent=11 // pred_check
          %p149 = pneg %p102
        $region22: #{_fused_stage.1} parent=11 // pred_check_branch
          %151 = sbr.rel (%p149) target = $region24
        $region23: #{_fused_stage.1} parent=11 // pred_region
          _
        $region24: #{_fused_stage.1} parent=11 // pred_fallthru
          _
      $region12: #{_fused_stage.1} parent=5 // pred_fallthru
        _
      %p152 = scmp.lt.s32.totalorder %s13, 2
      // Predicated region
      $region25: #{_fused_stage.1} parent=5 // pred_check
        %p153 = pneg %p152
      $region26: #{_fused_stage.1} parent=5 // pred_check_branch
        %155 = sbr.rel (%p153) target = $region28
      $region27: #{_fused_stage.1} parent=5 // pred_region
        // Predicated region
        $region29: #{_fused_stage.1} parent=27 // pred_check
          %p156 = pneg %p33
        $region30: #{_fused_stage.1} parent=27 // pred_check_branch
          %158 = sbr.rel (%p156) target = $region32
        $region31: #{_fused_stage.1} parent=27 // pred_region
          %p159 = scmp.lt.s32.totalorder %s13, 1
          %s160 = scalar_select %p159, %s13, 1
          %s161 = smul.addr %s160, 45
          %s162 = smul.addr %s161, 4
          %s163 = scalar_lea.vmem %s0, %s162
        $region32: #{_fused_stage.1} parent=27 // pred_fallthru
          _
      $region28: #{_fused_stage.1} parent=5 // pred_fallthru
        _
      %p164 = scmp.le.s32.totalorder 1, %s13
      %p165 = scmp.lt.s32.totalorder %s13, 3
      %p166 = pnand %p164, %p165
      %p167 = pneg %p166
      // Predicated region
      $region33: #{_fused_stage.1} parent=5 // pred_check
        _
      $region34: #{_fused_stage.1} parent=5 // pred_check_branch
        %169 = sbr.rel (%p166) target = $region36
      $region35: #{_fused_stage.1} parent=5 // pred_region
        %s170 = ssub.s32 %s13, 1
        %p171 = scmp.lt.s32.totalorder %s18, 1
        %s172 = scalar_select %p171, %s18, 1
        %s173 = smul.addr %s172, 45
        %s174 = smul.addr %s173, 4
        %s175 = scalar_lea.vmem %s0, %s174
        %p176 = pneg %p39
        %p177 = pneg %p36
        %p178 = pneg %p60
        %p179 = pneg %p57
        %p180 = pneg %p81
        %p181 = pneg %p78
        %p182 = pneg %p102
        %p183 = pneg %p99
        %p184 = pneg %p128
        %p185 = pneg %p125
        %s186 = sand.u32 %s115, 1
        %s187 = scalar_lea.sflag [#allocation3], %s186
        %s188 = sand.u32 %s115, 1
        %s189 = smul.addr %s188, 180
        %s190 = scalar_lea.vmem [#allocation2], %s189
        %p191 = scmp.lt.s32.totalorder %s18, 1
        %s192 = scalar_select %p191, %s18, 1
        %s193 = smul.addr %s192, 45
        %s194 = smul.addr %s193, 4
        %s195 = scalar_lea.vmem %s0, %s194
        %v197 = vld [vmem:[%s1] sm:$0xff]
        %v198 = vld [vmem:[%s1 + $0x8] sm:$0xff]
        %v199 = vld [vmem:[%s1 + $0x10] sm:$0xff]
        %v200 = vld [vmem:[%s1 + $0x18] sm:$0xff]
        %v201 = vld [vmem:[%s1 + $0x20] sm:$0xff]
        %v202 = vld [vmem:[%s1 + $0x28] sm:$0xff]
        %v203 = vld [vmem:[%s1 + $0x30] sm:$0xff]
        %v204 = vld [vmem:[%s1 + $0x38] sm:$0xff]
        %v205 = vld [vmem:[%s1 + $0x40] sm:$0xff]
        %v206 = vld [vmem:[%s1 + $0x48] sm:$0xff]
        %v207 = vld [vmem:[%s1 + $0x50] sm:$0xff]
        %v208 = vld [vmem:[%s1 + $0x58] sm:$0xff]
        %v209 = vld [vmem:[%s1 + $0x60] sm:$0xff]
        %v210 = vld [vmem:[%s1 + $0x68] sm:$0xff]
        %v211 = vld [vmem:[%s1 + $0x70] sm:$0xff]
        %v212 = vld [vmem:[%s1 + $0x78] sm:$0xff]
        %v213 = vld [vmem:[%s1 + $0x80] sm:$0xff]
        %v214 = vld [vmem:[%s1 + $0x88] sm:$0xff]
        %v215 = vld [vmem:[%s1 + $0x90] sm:$0xff]
        %v216 = vld [vmem:[%s1 + $0x98] sm:$0xff]
        %v217 = vld [vmem:[%s1 + $0xa0] sm:$0xff]
        %v218 = vld [vmem:[%s1 + $0xa8] sm:$0xff]
        %v219 = vld [vmem:[%s1 + $0xb0] sm:$0xff]
        %v220 = vld [vmem:[%s1 + $0xb8] sm:$0xff]
        %v221 = vld [vmem:[%s1 + $0xc0] sm:$0xff]
        %v222 = vld [vmem:[%s1 + $0xc8] sm:$0xff]
        %v223 = vld [vmem:[%s1 + $0xd0] sm:$0xff]
        %v224 = vld [vmem:[%s1 + $0xd8] sm:$0xff]
        %v225 = vld [vmem:[%s1 + $0xe0] sm:$0xff]
        %v226 = vld [vmem:[%s1 + $0xe8] sm:$0xff]
        %v227 = vld [vmem:[%s1 + $0xf0] sm:$0xff]
        %v228 = vld [vmem:[%s1 + $0xf8] sm:$0xff]
        %v229 = vld [vmem:[%s1 + $0x100] sm:$0xff]
        %v230 = vld [vmem:[%s1 + $0x108] sm:$0xff]
        %v231 = vld [vmem:[%s1 + $0x110] sm:$0xff]
        %v232 = vld [vmem:[%s1 + $0x118] sm:$0xff]
        %v233 = vld [vmem:[%s1 + $0x120] sm:$0xff]
        %v234 = vld [vmem:[%s1 + $0x128] sm:$0xff]
        %v235 = vld [vmem:[%s1 + $0x130] sm:$0xff]
        %v236 = vld [vmem:[%s1 + $0x138] sm:$0xff]
        %v237 = vld [vmem:[%s1 + $0x140] sm:$0xff]
        %v238 = vld [vmem:[%s1 + $0x148] sm:$0xff]
        %v239 = vld [vmem:[%s1 + $0x150] sm:$0xff]
        %v240 = vld [vmem:[%s1 + $0x158] sm:$0xff]
        %v241 = vld [vmem:[%s1 + $0x160] sm:$0xff]
        %v242 = vld [vmem:[%s195] sm:$0xf]
        %v243 = vld [vmem:[%s195 + $0x4] sm:$0xf]
        %v244 = vld [vmem:[%s195 + $0x8] sm:$0xf]
        %v245 = vld [vmem:[%s195 + $0xc] sm:$0xf]
        %v246 = vld [vmem:[%s195 + $0x10] sm:$0xf]
        %v247 = vld [vmem:[%s195 + $0x14] sm:$0xf]
        %v248 = vld [vmem:[%s195 + $0x18] sm:$0xf]
        %v249 = vld [vmem:[%s195 + $0x1c] sm:$0xf]
        %v250 = vld [vmem:[%s195 + $0x20] sm:$0xf]
        %v251 = vld [vmem:[%s195 + $0x24] sm:$0xf]
        %v252 = vld [vmem:[%s195 + $0x28] sm:$0xf]
        %v253 = vld [vmem:[%s195 + $0x2c] sm:$0xf]
        %v254 = vld [vmem:[%s195 + $0x30] sm:$0xf]
        %v255 = vld [vmem:[%s195 + $0x34] sm:$0xf]
        %v256 = vld [vmem:[%s195 + $0x38] sm:$0xf]
        %v257 = vld [vmem:[%s195 + $0x3c] sm:$0xf]
        %v258 = vld [vmem:[%s195 + $0x40] sm:$0xf]
        %v259 = vld [vmem:[%s195 + $0x44] sm:$0xf]
        %v260 = vld [vmem:[%s195 + $0x48] sm:$0xf]
        %v261 = vld [vmem:[%s195 + $0x4c] sm:$0xf]
        %v262 = vld [vmem:[%s195 + $0x50] sm:$0xf]
        %v263 = vld [vmem:[%s195 + $0x54] sm:$0xf]
        %v264 = vld [vmem:[%s195 + $0x58] sm:$0xf]
        %v265 = vld [vmem:[%s195 + $0x5c] sm:$0xf]
        %v266 = vld [vmem:[%s195 + $0x60] sm:$0xf]
        %v267 = vld [vmem:[%s195 + $0x64] sm:$0xf]
        %v268 = vld [vmem:[%s195 + $0x68] sm:$0xf]
        %v269 = vld [vmem:[%s195 + $0x6c] sm:$0xf]
        %v270 = vld [vmem:[%s195 + $0x70] sm:$0xf]
        %v271 = vld [vmem:[%s195 + $0x74] sm:$0xf]
        %v272 = vld [vmem:[%s195 + $0x78] sm:$0xf]
        %v273 = vld [vmem:[%s195 + $0x7c] sm:$0xf]
        %v274 = vld [vmem:[%s195 + $0x80] sm:$0xf]
        %v275 = vld [vmem:[%s195 + $0x84] sm:$0xf]
        %v276 = vld [vmem:[%s195 + $0x88] sm:$0xf]
        %v277 = vld [vmem:[%s195 + $0x8c] sm:$0xf]
        %v278 = vld [vmem:[%s195 + $0x90] sm:$0xf]
        %v279 = vld [vmem:[%s195 + $0x94] sm:$0xf]
        %v280 = vld [vmem:[%s195 + $0x98] sm:$0xf]
        %v281 = vld [vmem:[%s195 + $0x9c] sm:$0xf]
        %v282 = vld [vmem:[%s195 + $0xa0] sm:$0xf]
        %v283 = vld [vmem:[%s195 + $0xa4] sm:$0xf]
        %v284 = vld [vmem:[%s195 + $0xa8] sm:$0xf]
        %v285 = vld [vmem:[%s195 + $0xac] sm:$0xf]
        %v286 = vld [vmem:[%s195 + $0xb0] sm:$0xf]
        %v287 = vld [vmem:[%s2] sm:$0xf]
        %v288 = vld [vmem:[%s2 + $0x4] sm:$0xf]
        %v289 = vld [vmem:[%s2 + $0x8] sm:$0xf]
        %v290 = vld [vmem:[%s2 + $0xc] sm:$0x3]
        %v291 = vld [vmem:[%s3] sm:$0x1]
        %v337 = vunpack.c.l.b16 %v242
        %v338 = vunpack.c.l.b16 %v243
        %v339 = vunpack.c.l.b16 %v244
        %v340 = vunpack.c.l.b16 %v245
        %v341 = vunpack.c.l.b16 %v246
        %v342 = vunpack.c.l.b16 %v247
        %v343 = vunpack.c.l.b16 %v248
        %v344 = vunpack.c.l.b16 %v249
        %v345 = vunpack.c.l.b16 %v250
        %v346 = vunpack.c.l.b16 %v251
        %v347 = vunpack.c.l.b16 %v252
        %v348 = vunpack.c.l.b16 %v253
        %v349 = vunpack.c.l.b16 %v254
        %v350 = vunpack.c.l.b16 %v255
        %v351 = vunpack.c.l.b16 %v256
        %v352 = vunpack.c.l.b16 %v257
        %v353 = vunpack.c.l.b16 %v258
        %v354 = vunpack.c.l.b16 %v259
        %v355 = vunpack.c.l.b16 %v260
        %v356 = vunpack.c.l.b16 %v261
        %v357 = vunpack.c.l.b16 %v262
        %v358 = vunpack.c.l.b16 %v263
        %v359 = vunpack.c.l.b16 %v264
        %v360 = vunpack.c.l.b16 %v265
        %v361 = vunpack.c.l.b16 %v266
        %v362 = vunpack.c.l.b16 %v267
        %v363 = vunpack.c.l.b16 %v268
        %v364 = vunpack.c.l.b16 %v269
        %v365 = vunpack.c.l.b16 %v270
        %v366 = vunpack.c.l.b16 %v271
        %v367 = vunpack.c.l.b16 %v272
        %v368 = vunpack.c.l.b16 %v273
        %v369 = vunpack.c.l.b16 %v274
        %v370 = vunpack.c.l.b16 %v275
        %v371 = vunpack.c.l.b16 %v276
        %v372 = vunpack.c.l.b16 %v277
        %v373 = vunpack.c.l.b16 %v278
        %v374 = vunpack.c.l.b16 %v279
        %v375 = vunpack.c.l.b16 %v280
        %v376 = vunpack.c.l.b16 %v281
        %v377 = vunpack.c.l.b16 %v282
        %v378 = vunpack.c.l.b16 %v283
        %v379 = vunpack.c.l.b16 %v284
        %v380 = vunpack.c.l.b16 %v285
        %v381 = vunpack.c.l.b16 %v286
        %v382 = vpack.c.b16 %v337, %v337
        %v383 = vpack.c.b16 %v339, %v338
        %v384 = vpack.c.b16 %v341, %v340
        %v385 = vpack.c.b16 %v343, %v342
        %v386 = vpack.c.b16 %v345, %v344
        %v387 = vpack.c.b16 %v347, %v346
        %v388 = vpack.c.b16 %v349, %v348
        %v389 = vpack.c.b16 %v351, %v350
        %v390 = vpack.c.b16 %v353, %v352
        %v391 = vpack.c.b16 %v355, %v354
        %v392 = vpack.c.b16 %v357, %v356
        %v393 = vpack.c.b16 %v359, %v358
        %v394 = vpack.c.b16 %v361, %v360
        %v395 = vpack.c.b16 %v363, %v362
        %v396 = vpack.c.b16 %v365, %v364
        %v397 = vpack.c.b16 %v367, %v366
        %v398 = vpack.c.b16 %v369, %v368
        %v399 = vpack.c.b16 %v371, %v370
        %v400 = vpack.c.b16 %v373, %v372
        %v401 = vpack.c.b16 %v375, %v374
        %v402 = vpack.c.b16 %v377, %v376
        %v403 = vpack.c.b16 %v379, %v378
        %v404 = vpack.c.b16 %v381, %v380
        %vm405 = vcmask 1043456
        %v408 = vsel %vm405, 0, %v382
        %vm409 = vsmask.f32 7424
        %v410 = vshrl.u32 0, 16
        %v412 = vshll.u32 0, 16
        %v414 = vrot.slane %v412, 1
        %v415 = vor.u32 %v410, %v414
        %v416 = vshll.u32 %v408, 16
        %v418 = vrot.slane %v416, 1
        %v419 = vsel %vm409, %v415, %v418
        %v420 = vshrl.u32 %v408, 16
        %v422 = vor.u32 %v420, %v418
        %v424 = vshll.u32 %v383, 16
        %v426 = vrot.slane %v424, 1
        %v427 = vsel %vm409, %v422, %v426
        %v428 = vshrl.u32 %v383, 16
        %v430 = vor.u32 %v428, %v426
        %v432 = vshll.u32 %v384, 16
        %v434 = vrot.slane %v432, 1
        %v435 = vsel %vm409, %v430, %v434
        %v436 = vshrl.u32 %v384, 16
        %v438 = vor.u32 %v436, %v434
        %v440 = vshll.u32 %v385, 16
        %v442 = vrot.slane %v440, 1
        %v443 = vsel %vm409, %v438, %v442
        %v444 = vshrl.u32 %v385, 16
        %v446 = vor.u32 %v444, %v442
        %v448 = vshll.u32 %v386, 16
        %v450 = vrot.slane %v448, 1
        %v451 = vsel %vm409, %v446, %v450
        %v452 = vshrl.u32 %v386, 16
        %v454 = vor.u32 %v452, %v450
        %v456 = vshll.u32 %v387, 16
        %v458 = vrot.slane %v456, 1
        %v459 = vsel %vm409, %v454, %v458
        %v460 = vshrl.u32 %v387, 16
        %v462 = vor.u32 %v460, %v458
        %v464 = vshll.u32 %v388, 16
        %v466 = vrot.slane %v464, 1
        %v467 = vsel %vm409, %v462, %v466
        %v468 = vshrl.u32 %v388, 16
        %v470 = vor.u32 %v468, %v466
        %v472 = vshll.u32 %v389, 16
        %v474 = vrot.slane %v472, 1
        %v475 = vsel %vm409, %v470, %v474
        %v476 = vshrl.u32 %v389, 16
        %v478 = vor.u32 %v476, %v474
        %v480 = vshll.u32 %v390, 16
        %v482 = vrot.slane %v480, 1
        %v483 = vsel %vm409, %v478, %v482
        %v484 = vshrl.u32 %v390, 16
        %v486 = vor.u32 %v484, %v482
        %v488 = vshll.u32 %v391, 16
        %v490 = vrot.slane %v488, 1
        %v491 = vsel %vm409, %v486, %v490
        %v492 = vshrl.u32 %v391, 16
        %v494 = vor.u32 %v492, %v490
        %v496 = vshll.u32 %v392, 16
        %v498 = vrot.slane %v496, 1
        %v499 = vsel %vm409, %v494, %v498
        %v500 = vshrl.u32 %v392, 16
        %v502 = vor.u32 %v500, %v498
        %v504 = vshll.u32 %v393, 16
        %v506 = vrot.slane %v504, 1
        %v507 = vsel %vm409, %v502, %v506
        %v508 = vshrl.u32 %v393, 16
        %v510 = vor.u32 %v508, %v506
        %v512 = vshll.u32 %v394, 16
        %v514 = vrot.slane %v512, 1
        %v515 = vsel %vm409, %v510, %v514
        %v516 = vshrl.u32 %v394, 16
        %v518 = vor.u32 %v516, %v514
        %v520 = vshll.u32 %v395, 16
        %v522 = vrot.slane %v520, 1
        %v523 = vsel %vm409, %v518, %v522
        %v524 = vshrl.u32 %v395, 16
        %v526 = vor.u32 %v524, %v522
        %v528 = vshll.u32 %v396, 16
        %v530 = vrot.slane %v528, 1
        %v531 = vsel %vm409, %v526, %v530
        %v532 = vshrl.u32 %v396, 16
        %v534 = vor.u32 %v532, %v530
        %v536 = vshll.u32 %v397, 16
        %v538 = vrot.slane %v536, 1
        %v539 = vsel %vm409, %v534, %v538
        %v540 = vshrl.u32 %v397, 16
        %v542 = vor.u32 %v540, %v538
        %v544 = vshll.u32 %v398, 16
        %v546 = vrot.slane %v544, 1
        %v547 = vsel %vm409, %v542, %v546
        %v548 = vshrl.u32 %v398, 16
        %v550 = vor.u32 %v548, %v546
        %v552 = vshll.u32 %v399, 16
        %v554 = vrot.slane %v552, 1
        %v555 = vsel %vm409, %v550, %v554
        %v556 = vshrl.u32 %v399, 16
        %v558 = vor.u32 %v556, %v554
        %v560 = vshll.u32 %v400, 16
        %v562 = vrot.slane %v560, 1
        %v563 = vsel %vm409, %v558, %v562
        %v564 = vshrl.u32 %v400, 16
        %v566 = vor.u32 %v564, %v562
        %v568 = vshll.u32 %v401, 16
        %v570 = vrot.slane %v568, 1
        %v571 = vsel %vm409, %v566, %v570
        %v572 = vshrl.u32 %v401, 16
        %v574 = vor.u32 %v572, %v570
        %v576 = vshll.u32 %v402, 16
        %v578 = vrot.slane %v576, 1
        %v579 = vsel %vm409, %v574, %v578
        %v580 = vshrl.u32 %v402, 16
        %v582 = vor.u32 %v580, %v578
        %v584 = vshll.u32 %v403, 16
        %v586 = vrot.slane %v584, 1
        %v587 = vsel %vm409, %v582, %v586
        %v588 = vshrl.u32 %v403, 16
        %v590 = vor.u32 %v588, %v586
        %591 = vrot.lane.b32.xlu0 %v419, 3
        %v592 = vpop.permute.xlu0 %591
        %593 = vrot.lane.b32.xlu0 %v427, 3
        %v594 = vpop.permute.xlu0 %593
        %595 = vrot.lane.b32.xlu0 %v435, 3
        %v596 = vpop.permute.xlu0 %595
        %597 = vrot.lane.b32.xlu0 %v443, 3
        %v598 = vpop.permute.xlu0 %597
        %599 = vrot.lane.b32.xlu0 %v451, 3
        %v600 = vpop.permute.xlu0 %599
        %601 = vrot.lane.b32.xlu0 %v459, 3
        %v602 = vpop.permute.xlu0 %601
        %603 = vrot.lane.b32.xlu0 %v467, 3
        %v604 = vpop.permute.xlu0 %603
        %605 = vrot.lane.b32.xlu0 %v475, 3
        %v606 = vpop.permute.xlu0 %605
        %607 = vrot.lane.b32.xlu0 %v483, 3
        %v608 = vpop.permute.xlu0 %607
        %609 = vrot.lane.b32.xlu0 %v491, 3
        %v610 = vpop.permute.xlu0 %609
        %611 = vrot.lane.b32.xlu0 %v499, 3
        %v612 = vpop.permute.xlu0 %611
        %613 = vrot.lane.b32.xlu0 %v507, 3
        %v614 = vpop.permute.xlu0 %613
        %615 = vrot.lane.b32.xlu0 %v515, 3
        %v616 = vpop.permute.xlu0 %615
        %617 = vrot.lane.b32.xlu0 %v523, 3
        %v618 = vpop.permute.xlu0 %617
        %619 = vrot.lane.b32.xlu0 %v531, 3
        %v620 = vpop.permute.xlu0 %619
        %621 = vrot.lane.b32.xlu0 %v539, 3
        %v622 = vpop.permute.xlu0 %621
        %623 = vrot.lane.b32.xlu0 %v547, 3
        %v624 = vpop.permute.xlu0 %623
        %625 = vrot.lane.b32.xlu0 %v555, 3
        %v626 = vpop.permute.xlu0 %625
        %627 = vrot.lane.b32.xlu0 %v563, 3
        %v628 = vpop.permute.xlu0 %627
        %629 = vrot.lane.b32.xlu0 %v571, 3
        %v630 = vpop.permute.xlu0 %629
        %631 = vrot.lane.b32.xlu0 %v579, 3
        %v632 = vpop.permute.xlu0 %631
        %633 = vrot.lane.b32.xlu0 %v587, 3
        %v634 = vpop.permute.xlu0 %633
        %635 = vrot.lane.b32.xlu0 %v590, 3
        %v636 = vpop.permute.xlu0 %635
        %vm639 = vcmask 1046528
        %v640 = vrot.slane 0, 1
        %v641 = vrot.slane %v408, 1
        %v642 = vsel %vm639, %v640, %v641
        %v643 = vrot.slane %v383, 1
        %v644 = vsel %vm639, %v641, %v643
        %v645 = vrot.slane %v384, 1
        %v646 = vsel %vm639, %v643, %v645
        %v647 = vrot.slane %v385, 1
        %v648 = vsel %vm639, %v645, %v647
        %v649 = vrot.slane %v386, 1
        %v650 = vsel %vm639, %v647, %v649
        %v651 = vrot.slane %v387, 1
        %v652 = vsel %vm639, %v649, %v651
        %v653 = vrot.slane %v388, 1
        %v654 = vsel %vm639, %v651, %v653
        %v655 = vrot.slane %v389, 1
        %v656 = vsel %vm639, %v653, %v655
        %v657 = vrot.slane %v390, 1
        %v658 = vsel %vm639, %v655, %v657
        %v659 = vrot.slane %v391, 1
        %v660 = vsel %vm639, %v657, %v659
        %v661 = vrot.slane %v392, 1
        %v662 = vsel %vm639, %v659, %v661
        %v663 = vrot.slane %v393, 1
        %v664 = vsel %vm639, %v661, %v663
        %v665 = vrot.slane %v394, 1
        %v666 = vsel %vm639, %v663, %v665
        %v667 = vrot.slane %v395, 1
        %v668 = vsel %vm639, %v665, %v667
        %v669 = vrot.slane %v396, 1
        %v670 = vsel %vm639, %v667, %v669
        %v671 = vrot.slane %v397, 1
        %v672 = vsel %vm639, %v669, %v671
        %v673 = vrot.slane %v398, 1
        %v674 = vsel %vm639, %v671, %v673
        %v675 = vrot.slane %v399, 1
        %v676 = vsel %vm639, %v673, %v675
        %v677 = vrot.slane %v400, 1
        %v678 = vsel %vm639, %v675, %v677
        %v679 = vrot.slane %v401, 1
        %v680 = vsel %vm639, %v677, %v679
        %v681 = vrot.slane %v402, 1
        %v682 = vsel %vm639, %v679, %v681
        %v683 = vrot.slane %v403, 1
        %v684 = vsel %vm639, %v681, %v683
        %685 = vrot.lane.b32.xlu0 %v642, 6
        %v686 = vpop.permute.xlu0 %685
        %687 = vrot.lane.b32.xlu0 %v644, 6
        %v688 = vpop.permute.xlu0 %687
        %689 = vrot.lane.b32.xlu0 %v646, 6
        %v690 = vpop.permute.xlu0 %689
        %691 = vrot.lane.b32.xlu0 %v648, 6
        %v692 = vpop.permute.xlu0 %691
        %693 = vrot.lane.b32.xlu0 %v650, 6
        %v694 = vpop.permute.xlu0 %693
        %695 = vrot.lane.b32.xlu0 %v652, 6
        %v696 = vpop.permute.xlu0 %695
        %697 = vrot.lane.b32.xlu0 %v654, 6
        %v698 = vpop.permute.xlu0 %697
        %699 = vrot.lane.b32.xlu0 %v656, 6
        %v700 = vpop.permute.xlu0 %699
        %701 = vrot.lane.b32.xlu0 %v658, 6
        %v702 = vpop.permute.xlu0 %701
        %703 = vrot.lane.b32.xlu0 %v660, 6
        %v704 = vpop.permute.xlu0 %703
        %705 = vrot.lane.b32.xlu0 %v662, 6
        %v706 = vpop.permute.xlu0 %705
        %707 = vrot.lane.b32.xlu0 %v664, 6
        %v708 = vpop.permute.xlu0 %707
        %709 = vrot.lane.b32.xlu0 %v666, 6
        %v710 = vpop.permute.xlu0 %709
        %711 = vrot.lane.b32.xlu0 %v668, 6
        %v712 = vpop.permute.xlu0 %711
        %713 = vrot.lane.b32.xlu0 %v670, 6
        %v714 = vpop.permute.xlu0 %713
        %715 = vrot.lane.b32.xlu0 %v672, 6
        %v716 = vpop.permute.xlu0 %715
        %717 = vrot.lane.b32.xlu0 %v674, 6
        %v718 = vpop.permute.xlu0 %717
        %719 = vrot.lane.b32.xlu0 %v676, 6
        %v720 = vpop.permute.xlu0 %719
        %721 = vrot.lane.b32.xlu0 %v678, 6
        %v722 = vpop.permute.xlu0 %721
        %723 = vrot.lane.b32.xlu0 %v680, 6
        %v724 = vpop.permute.xlu0 %723
        %725 = vrot.lane.b32.xlu0 %v682, 6
        %v726 = vpop.permute.xlu0 %725
        %727 = vrot.lane.b32.xlu0 %v684, 6
        %v728 = vpop.permute.xlu0 %727
        %729 = vrot.lane.b32.xlu0 %v683, 6
        %v730 = vpop.permute.xlu0 %729
        %v731 = vrot.slane %v404, 1
        %v732 = vsel %vm639, %v683, %v731
        %733 = vrot.lane.b32.xlu0 %v644, 9
        %v734 = vpop.permute.xlu0 %733
        %735 = vrot.lane.b32.xlu0 %v646, 9
        %v736 = vpop.permute.xlu0 %735
        %737 = vrot.lane.b32.xlu0 %v648, 9
        %v738 = vpop.permute.xlu0 %737
        %739 = vrot.lane.b32.xlu0 %v650, 9
        %v740 = vpop.permute.xlu0 %739
        %741 = vrot.lane.b32.xlu0 %v652, 9
        %v742 = vpop.permute.xlu0 %741
        %743 = vrot.lane.b32.xlu0 %v654, 9
        %v744 = vpop.permute.xlu0 %743
        %745 = vrot.lane.b32.xlu0 %v656, 9
        %v746 = vpop.permute.xlu0 %745
        %747 = vrot.lane.b32.xlu0 %v658, 9
        %v748 = vpop.permute.xlu0 %747
        %749 = vrot.lane.b32.xlu0 %v660, 9
        %v750 = vpop.permute.xlu0 %749
        %751 = vrot.lane.b32.xlu0 %v662, 9
        %v752 = vpop.permute.xlu0 %751
        %753 = vrot.lane.b32.xlu0 %v664, 9
        %v754 = vpop.permute.xlu0 %753
        %755 = vrot.lane.b32.xlu0 %v666, 9
        %v756 = vpop.permute.xlu0 %755
        %757 = vrot.lane.b32.xlu0 %v668, 9
        %v758 = vpop.permute.xlu0 %757
        %759 = vrot.lane.b32.xlu0 %v670, 9
        %v760 = vpop.permute.xlu0 %759
        %761 = vrot.lane.b32.xlu0 %v672, 9
        %v762 = vpop.permute.xlu0 %761
        %763 = vrot.lane.b32.xlu0 %v674, 9
        %v764 = vpop.permute.xlu0 %763
        %765 = vrot.lane.b32.xlu0 %v676, 9
        %v766 = vpop.permute.xlu0 %765
        %767 = vrot.lane.b32.xlu0 %v678, 9
        %v768 = vpop.permute.xlu0 %767
        %769 = vrot.lane.b32.xlu0 %v680, 9
        %v770 = vpop.permute.xlu0 %769
        %771 = vrot.lane.b32.xlu0 %v682, 9
        %v772 = vpop.permute.xlu0 %771
        %773 = vrot.lane.b32.xlu0 %v684, 9
        %v774 = vpop.permute.xlu0 %773
        %775 = vrot.lane.b32.xlu0 %v732, 9
        %v776 = vpop.permute.xlu0 %775
        %777 = vrot.lane.b32.xlu0 %v731, 9
        %v778 = vpop.permute.xlu0 %777
        %vm779 = vsmask.f32 6400
        %v780 = vrot.slane %v420, 1
        %v781 = vrot.slane %v416, 2
        %v782 = vor.u32 %v780, %v781
        %v783 = vrot.slane %v428, 1
        %v784 = vrot.slane %v424, 2
        %v785 = vor.u32 %v783, %v784
        %v786 = vsel %vm779, %v782, %v785
        %v787 = vrot.slane %v436, 1
        %v788 = vrot.slane %v432, 2
        %v789 = vor.u32 %v787, %v788
        %v790 = vsel %vm779, %v785, %v789
        %v791 = vrot.slane %v444, 1
        %v792 = vrot.slane %v440, 2
        %v793 = vor.u32 %v791, %v792
        %v794 = vsel %vm779, %v789, %v793
        %v795 = vrot.slane %v452, 1
        %v796 = vrot.slane %v448, 2
        %v797 = vor.u32 %v795, %v796
        %v798 = vsel %vm779, %v793, %v797
        %v799 = vrot.slane %v460, 1
        %v800 = vrot.slane %v456, 2
        %v801 = vor.u32 %v799, %v800
        %v802 = vsel %vm779, %v797, %v801
        %v803 = vrot.slane %v468, 1
        %v804 = vrot.slane %v464, 2
        %v805 = vor.u32 %v803, %v804
        %v806 = vsel %vm779, %v801, %v805
        %v807 = vrot.slane %v476, 1
        %v808 = vrot.slane %v472, 2
        %v809 = vor.u32 %v807, %v808
        %v810 = vsel %vm779, %v805, %v809
        %v811 = vrot.slane %v484, 1
        %v812 = vrot.slane %v480, 2
        %v813 = vor.u32 %v811, %v812
        %v814 = vsel %vm779, %v809, %v813
        %v815 = vrot.slane %v492, 1
        %v816 = vrot.slane %v488, 2
        %v817 = vor.u32 %v815, %v816
        %v818 = vsel %vm779, %v813, %v817
        %v819 = vrot.slane %v500, 1
        %v820 = vrot.slane %v496, 2
        %v821 = vor.u32 %v819, %v820
        %v822 = vsel %vm779, %v817, %v821
        %v823 = vrot.slane %v508, 1
        %v824 = vrot.slane %v504, 2
        %v825 = vor.u32 %v823, %v824
        %v826 = vsel %vm779, %v821, %v825
        %v827 = vrot.slane %v516, 1
        %v828 = vrot.slane %v512, 2
        %v829 = vor.u32 %v827, %v828
        %v830 = vsel %vm779, %v825, %v829
        %v831 = vrot.slane %v524, 1
        %v832 = vrot.slane %v520, 2
        %v833 = vor.u32 %v831, %v832
        %v834 = vsel %vm779, %v829, %v833
        %v835 = vrot.slane %v532, 1
        %v836 = vrot.slane %v528, 2
        %v837 = vor.u32 %v835, %v836
        %v838 = vsel %vm779, %v833, %v837
        %v839 = vrot.slane %v540, 1
        %v840 = vrot.slane %v536, 2
        %v841 = vor.u32 %v839, %v840
        %v842 = vsel %vm779, %v837, %v841
        %v843 = vrot.slane %v548, 1
        %v844 = vrot.slane %v544, 2
        %v845 = vor.u32 %v843, %v844
        %v846 = vsel %vm779, %v841, %v845
        %v847 = vrot.slane %v556, 1
        %v848 = vrot.slane %v552, 2
        %v849 = vor.u32 %v847, %v848
        %v850 = vsel %vm779, %v845, %v849
        %v851 = vrot.slane %v564, 1
        %v852 = vrot.slane %v560, 2
        %v853 = vor.u32 %v851, %v852
        %v854 = vsel %vm779, %v849, %v853
        %v855 = vrot.slane %v572, 1
        %v856 = vrot.slane %v568, 2
        %v857 = vor.u32 %v855, %v856
        %v858 = vsel %vm779, %v853, %v857
        %v859 = vrot.slane %v580, 1
        %v860 = vrot.slane %v576, 2
        %v861 = vor.u32 %v859, %v860
        %v862 = vsel %vm779, %v857, %v861
        %v863 = vrot.slane %v588, 1
        %v864 = vrot.slane %v584, 2
        %v865 = vor.u32 %v863, %v864
        %v866 = vsel %vm779, %v861, %v865
        %v868 = vshrl.u32 %v404, 16
        %v870 = vrot.slane %v868, 1
        %v871 = vshll.u32 %v404, 16
        %v873 = vrot.slane %v871, 2
        %v874 = vor.u32 %v870, %v873
        %v875 = vsel %vm779, %v865, %v874
        %876 = vrot.lane.b32.xlu0 %v786, 12
        %v877 = vpop.permute.xlu0 %876
        %878 = vrot.lane.b32.xlu0 %v790, 12
        %v879 = vpop.permute.xlu0 %878
        %880 = vrot.lane.b32.xlu0 %v794, 12
        %v881 = vpop.permute.xlu0 %880
        %882 = vrot.lane.b32.xlu0 %v798, 12
        %v883 = vpop.permute.xlu0 %882
        %884 = vrot.lane.b32.xlu0 %v802, 12
        %v885 = vpop.permute.xlu0 %884
        %886 = vrot.lane.b32.xlu0 %v806, 12
        %v887 = vpop.permute.xlu0 %886
        %888 = vrot.lane.b32.xlu0 %v810, 12
        %v889 = vpop.permute.xlu0 %888
        %890 = vrot.lane.b32.xlu0 %v814, 12
        %v891 = vpop.permute.xlu0 %890
        %892 = vrot.lane.b32.xlu0 %v818, 12
        %v893 = vpop.permute.xlu0 %892
        %894 = vrot.lane.b32.xlu0 %v822, 12
        %v895 = vpop.permute.xlu0 %894
        %896 = vrot.lane.b32.xlu0 %v826, 12
        %v897 = vpop.permute.xlu0 %896
        %898 = vrot.lane.b32.xlu0 %v830, 12
        %v899 = vpop.permute.xlu0 %898
        %900 = vrot.lane.b32.xlu0 %v834, 12
        %v901 = vpop.permute.xlu0 %900
        %902 = vrot.lane.b32.xlu0 %v838, 12
        %v903 = vpop.permute.xlu0 %902
        %904 = vrot.lane.b32.xlu0 %v842, 12
        %v905 = vpop.permute.xlu0 %904
        %906 = vrot.lane.b32.xlu0 %v846, 12
        %v907 = vpop.permute.xlu0 %906
        %908 = vrot.lane.b32.xlu0 %v850, 12
        %v909 = vpop.permute.xlu0 %908
        %910 = vrot.lane.b32.xlu0 %v854, 12
        %v911 = vpop.permute.xlu0 %910
        %912 = vrot.lane.b32.xlu0 %v858, 12
        %v913 = vpop.permute.xlu0 %912
        %914 = vrot.lane.b32.xlu0 %v862, 12
        %v915 = vpop.permute.xlu0 %914
        %916 = vrot.lane.b32.xlu0 %v866, 12
        %v917 = vpop.permute.xlu0 %916
        %918 = vrot.lane.b32.xlu0 %v875, 12
        %v919 = vpop.permute.xlu0 %918
        %920 = vrot.lane.b32.xlu0 %v874, 12
        %v921 = vpop.permute.xlu0 %920
        %vm922 = vcmask 1045504
        %v923 = vrot.slane %v408, 2
        %v924 = vrot.slane %v383, 2
        %v925 = vsel %vm922, %v923, %v924
        %v926 = vrot.slane %v384, 2
        %v927 = vsel %vm922, %v924, %v926
        %v928 = vrot.slane %v385, 2
        %v929 = vsel %vm922, %v926, %v928
        %v930 = vrot.slane %v386, 2
        %v931 = vsel %vm922, %v928, %v930
        %v932 = vrot.slane %v387, 2
        %v933 = vsel %vm922, %v930, %v932
        %v934 = vrot.slane %v388, 2
        %v935 = vsel %vm922, %v932, %v934
        %v936 = vrot.slane %v389, 2
        %v937 = vsel %vm922, %v934, %v936
        %v938 = vrot.slane %v390, 2
        %v939 = vsel %vm922, %v936, %v938
        %v940 = vrot.slane %v391, 2
        %v941 = vsel %vm922, %v938, %v940
        %v942 = vrot.slane %v392, 2
        %v943 = vsel %vm922, %v940, %v942
        %v944 = vrot.slane %v393, 2
        %v945 = vsel %vm922, %v942, %v944
        %v946 = vrot.slane %v394, 2
        %v947 = vsel %vm922, %v944, %v946
        %v948 = vrot.slane %v395, 2
        %v949 = vsel %vm922, %v946, %v948
        %v950 = vrot.slane %v396, 2
        %v951 = vsel %vm922, %v948, %v950
        %v952 = vrot.slane %v397, 2
        %v953 = vsel %vm922, %v950, %v952
        %v954 = vrot.slane %v398, 2
        %v955 = vsel %vm922, %v952, %v954
        %v956 = vrot.slane %v399, 2
        %v957 = vsel %vm922, %v954, %v956
        %v958 = vrot.slane %v400, 2
        %v959 = vsel %vm922, %v956, %v958
        %v960 = vrot.slane %v401, 2
        %v961 = vsel %vm922, %v958, %v960
        %v962 = vrot.slane %v402, 2
        %v963 = vsel %vm922, %v960, %v962
        %v964 = vrot.slane %v403, 2
        %v965 = vsel %vm922, %v962, %v964
        %v966 = vrot.slane %v404, 2
        %v967 = vsel %vm922, %v964, %v966
        %v968 = vrot.slane 0, 2
        %v969 = vsel %vm922, %v966, %v968
        %970 = vrot.lane.b32.xlu0 %v925, 15
        %v971 = vpop.permute.xlu0 %970
        %972 = vrot.lane.b32.xlu0 %v927, 15
        %v973 = vpop.permute.xlu0 %972
        %974 = vrot.lane.b32.xlu0 %v929, 15
        %v975 = vpop.permute.xlu0 %974
        %976 = vrot.lane.b32.xlu0 %v931, 15
        %v977 = vpop.permute.xlu0 %976
        %978 = vrot.lane.b32.xlu0 %v933, 15
        %v979 = vpop.permute.xlu0 %978
        %980 = vrot.lane.b32.xlu0 %v935, 15
        %v981 = vpop.permute.xlu0 %980
        %982 = vrot.lane.b32.xlu0 %v937, 15
        %v983 = vpop.permute.xlu0 %982
        %984 = vrot.lane.b32.xlu0 %v939, 15
        %v985 = vpop.permute.xlu0 %984
        %986 = vrot.lane.b32.xlu0 %v941, 15
        %v987 = vpop.permute.xlu0 %986
        %988 = vrot.lane.b32.xlu0 %v943, 15
        %v989 = vpop.permute.xlu0 %988
        %990 = vrot.lane.b32.xlu0 %v945, 15
        %v991 = vpop.permute.xlu0 %990
        %992 = vrot.lane.b32.xlu0 %v947, 15
        %v993 = vpop.permute.xlu0 %992
        %994 = vrot.lane.b32.xlu0 %v949, 15
        %v995 = vpop.permute.xlu0 %994
        %996 = vrot.lane.b32.xlu0 %v951, 15
        %v997 = vpop.permute.xlu0 %996
        %998 = vrot.lane.b32.xlu0 %v953, 15
        %v999 = vpop.permute.xlu0 %998
        %1000 = vrot.lane.b32.xlu0 %v955, 15
        %v1001 = vpop.permute.xlu0 %1000
        %1002 = vrot.lane.b32.xlu0 %v957, 15
        %v1003 = vpop.permute.xlu0 %1002
        %1004 = vrot.lane.b32.xlu0 %v959, 15
        %v1005 = vpop.permute.xlu0 %1004
        %1006 = vrot.lane.b32.xlu0 %v961, 15
        %v1007 = vpop.permute.xlu0 %1006
        %1008 = vrot.lane.b32.xlu0 %v963, 15
        %v1009 = vpop.permute.xlu0 %1008
        %1010 = vrot.lane.b32.xlu0 %v965, 15
        %v1011 = vpop.permute.xlu0 %1010
        %1012 = vrot.lane.b32.xlu0 %v967, 15
        %v1013 = vpop.permute.xlu0 %1012
        %1014 = vrot.lane.b32.xlu0 %v969, 15
        %v1015 = vpop.permute.xlu0 %1014
        %v1016 = vsel %vm922, %v968, %v968
        %1017 = vrot.lane.b32.xlu0 %v927, 18
        %v1018 = vpop.permute.xlu0 %1017
        %1019 = vrot.lane.b32.xlu0 %v929, 18
        %v1020 = vpop.permute.xlu0 %1019
        %1021 = vrot.lane.b32.xlu0 %v931, 18
        %v1022 = vpop.permute.xlu0 %1021
        %1023 = vrot.lane.b32.xlu0 %v933, 18
        %v1024 = vpop.permute.xlu0 %1023
        %1025 = vrot.lane.b32.xlu0 %v935, 18
        %v1026 = vpop.permute.xlu0 %1025
        %1027 = vrot.lane.b32.xlu0 %v937, 18
        %v1028 = vpop.permute.xlu0 %1027
        %1029 = vrot.lane.b32.xlu0 %v939, 18
        %v1030 = vpop.permute.xlu0 %1029
        %1031 = vrot.lane.b32.xlu0 %v941, 18
        %v1032 = vpop.permute.xlu0 %1031
        %1033 = vrot.lane.b32.xlu0 %v943, 18
        %v1034 = vpop.permute.xlu0 %1033
        %1035 = vrot.lane.b32.xlu0 %v945, 18
        %v1036 = vpop.permute.xlu0 %1035
        %1037 = vrot.lane.b32.xlu0 %v947, 18
        %v1038 = vpop.permute.xlu0 %1037
        %1039 = vrot.lane.b32.xlu0 %v949, 18
        %v1040 = vpop.permute.xlu0 %1039
        %1041 = vrot.lane.b32.xlu0 %v951, 18
        %v1042 = vpop.permute.xlu0 %1041
        %1043 = vrot.lane.b32.xlu0 %v953, 18
        %v1044 = vpop.permute.xlu0 %1043
        %1045 = vrot.lane.b32.xlu0 %v955, 18
        %v1046 = vpop.permute.xlu0 %1045
        %1047 = vrot.lane.b32.xlu0 %v957, 18
        %v1048 = vpop.permute.xlu0 %1047
        %1049 = vrot.lane.b32.xlu0 %v959, 18
        %v1050 = vpop.permute.xlu0 %1049
        %1051 = vrot.lane.b32.xlu0 %v961, 18
        %v1052 = vpop.permute.xlu0 %1051
        %1053 = vrot.lane.b32.xlu0 %v963, 18
        %v1054 = vpop.permute.xlu0 %1053
        %1055 = vrot.lane.b32.xlu0 %v965, 18
        %v1056 = vpop.permute.xlu0 %1055
        %1057 = vrot.lane.b32.xlu0 %v967, 18
        %v1058 = vpop.permute.xlu0 %1057
        %1059 = vrot.lane.b32.xlu0 %v969, 18
        %v1060 = vpop.permute.xlu0 %1059
        %1061 = vrot.lane.b32.xlu0 %v1016, 18
        %v1062 = vpop.permute.xlu0 %1061
        %vm1063 = vsmask.f32 5376
        %v1064 = vrot.slane %v428, 2
        %v1065 = vrot.slane %v424, 3
        %v1066 = vor.u32 %v1064, %v1065
        %v1067 = vrot.slane %v436, 2
        %v1068 = vrot.slane %v432, 3
        %v1069 = vor.u32 %v1067, %v1068
        %v1070 = vsel %vm1063, %v1066, %v1069
        %v1071 = vrot.slane %v444, 2
        %v1072 = vrot.slane %v440, 3
        %v1073 = vor.u32 %v1071, %v1072
        %v1074 = vsel %vm1063, %v1069, %v1073
        %v1075 = vrot.slane %v452, 2
        %v1076 = vrot.slane %v448, 3
        %v1077 = vor.u32 %v1075, %v1076
        %v1078 = vsel %vm1063, %v1073, %v1077
        %v1079 = vrot.slane %v460, 2
        %v1080 = vrot.slane %v456, 3
        %v1081 = vor.u32 %v1079, %v1080
        %v1082 = vsel %vm1063, %v1077, %v1081
        %v1083 = vrot.slane %v468, 2
        %v1084 = vrot.slane %v464, 3
        %v1085 = vor.u32 %v1083, %v1084
        %v1086 = vsel %vm1063, %v1081, %v1085
        %v1087 = vrot.slane %v476, 2
        %v1088 = vrot.slane %v472, 3
        %v1089 = vor.u32 %v1087, %v1088
        %v1090 = vsel %vm1063, %v1085, %v1089
        %v1091 = vrot.slane %v484, 2
        %v1092 = vrot.slane %v480, 3
        %v1093 = vor.u32 %v1091, %v1092
        %v1094 = vsel %vm1063, %v1089, %v1093
        %v1095 = vrot.slane %v492, 2
        %v1096 = vrot.slane %v488, 3
        %v1097 = vor.u32 %v1095, %v1096
        %v1098 = vsel %vm1063, %v1093, %v1097
        %v1099 = vrot.slane %v500, 2
        %v1100 = vrot.slane %v496, 3
        %v1101 = vor.u32 %v1099, %v1100
        %v1102 = vsel %vm1063, %v1097, %v1101
        %v1103 = vrot.slane %v508, 2
        %v1104 = vrot.slane %v504, 3
        %v1105 = vor.u32 %v1103, %v1104
        %v1106 = vsel %vm1063, %v1101, %v1105
        %v1107 = vrot.slane %v516, 2
        %v1108 = vrot.slane %v512, 3
        %v1109 = vor.u32 %v1107, %v1108
        %v1110 = vsel %vm1063, %v1105, %v1109
        %v1111 = vrot.slane %v524, 2
        %v1112 = vrot.slane %v520, 3
        %v1113 = vor.u32 %v1111, %v1112
        %v1114 = vsel %vm1063, %v1109, %v1113
        %v1115 = vrot.slane %v532, 2
        %v1116 = vrot.slane %v528, 3
        %v1117 = vor.u32 %v1115, %v1116
        %v1118 = vsel %vm1063, %v1113, %v1117
        %v1119 = vrot.slane %v540, 2
        %v1120 = vrot.slane %v536, 3
        %v1121 = vor.u32 %v1119, %v1120
        %v1122 = vsel %vm1063, %v1117, %v1121
        %v1123 = vrot.slane %v548, 2
        %v1124 = vrot.slane %v544, 3
        %v1125 = vor.u32 %v1123, %v1124
        %v1126 = vsel %vm1063, %v1121, %v1125
        %v1127 = vrot.slane %v556, 2
        %v1128 = vrot.slane %v552, 3
        %v1129 = vor.u32 %v1127, %v1128
        %v1130 = vsel %vm1063, %v1125, %v1129
        %v1131 = vrot.slane %v564, 2
        %v1132 = vrot.slane %v560, 3
        %v1133 = vor.u32 %v1131, %v1132
        %v1134 = vsel %vm1063, %v1129, %v1133
        %v1135 = vrot.slane %v572, 2
        %v1136 = vrot.slane %v568, 3
        %v1137 = vor.u32 %v1135, %v1136
        %v1138 = vsel %vm1063, %v1133, %v1137
        %v1139 = vrot.slane %v580, 2
        %v1140 = vrot.slane %v576, 3
        %v1141 = vor.u32 %v1139, %v1140
        %v1142 = vsel %vm1063, %v1137, %v1141
        %v1143 = vrot.slane %v588, 2
        %v1144 = vrot.slane %v584, 3
        %v1145 = vor.u32 %v1143, %v1144
        %v1146 = vsel %vm1063, %v1141, %v1145
        %v1147 = vrot.slane %v868, 2
        %v1148 = vrot.slane %v871, 3
        %v1149 = vor.u32 %v1147, %v1148
        %v1150 = vsel %vm1063, %v1145, %v1149
        %v1151 = vrot.slane %v410, 2
        %v1152 = vrot.slane %v412, 3
        %v1153 = vor.u32 %v1151, %v1152
        %v1154 = vsel %vm1063, %v1149, %v1153
        %v1155 = vsel %vm1063, %v1153, %v1153
        %1156 = vrot.lane.b32.xlu0 %v1070, 21
        %v1157 = vpop.permute.xlu0 %1156
        %1158 = vrot.lane.b32.xlu0 %v1074, 21
        %v1159 = vpop.permute.xlu0 %1158
        %1160 = vrot.lane.b32.xlu0 %v1078, 21
        %v1161 = vpop.permute.xlu0 %1160
        %1162 = vrot.lane.b32.xlu0 %v1082, 21
        %v1163 = vpop.permute.xlu0 %1162
        %1164 = vrot.lane.b32.xlu0 %v1086, 21
        %v1165 = vpop.permute.xlu0 %1164
        %1166 = vrot.lane.b32.xlu0 %v1090, 21
        %v1167 = vpop.permute.xlu0 %1166
        %1168 = vrot.lane.b32.xlu0 %v1094, 21
        %v1169 = vpop.permute.xlu0 %1168
        %1170 = vrot.lane.b32.xlu0 %v1098, 21
        %v1171 = vpop.permute.xlu0 %1170
        %1172 = vrot.lane.b32.xlu0 %v1102, 21
        %v1173 = vpop.permute.xlu0 %1172
        %1174 = vrot.lane.b32.xlu0 %v1106, 21
        %v1175 = vpop.permute.xlu0 %1174
        %1176 = vrot.lane.b32.xlu0 %v1110, 21
        %v1177 = vpop.permute.xlu0 %1176
        %1178 = vrot.lane.b32.xlu0 %v1114, 21
        %v1179 = vpop.permute.xlu0 %1178
        %1180 = vrot.lane.b32.xlu0 %v1118, 21
        %v1181 = vpop.permute.xlu0 %1180
        %1182 = vrot.lane.b32.xlu0 %v1122, 21
        %v1183 = vpop.permute.xlu0 %1182
        %1184 = vrot.lane.b32.xlu0 %v1126, 21
        %v1185 = vpop.permute.xlu0 %1184
        %1186 = vrot.lane.b32.xlu0 %v1130, 21
        %v1187 = vpop.permute.xlu0 %1186
        %1188 = vrot.lane.b32.xlu0 %v1134, 21
        %v1189 = vpop.permute.xlu0 %1188
        %1190 = vrot.lane.b32.xlu0 %v1138, 21
        %v1191 = vpop.permute.xlu0 %1190
        %1192 = vrot.lane.b32.xlu0 %v1142, 21
        %v1193 = vpop.permute.xlu0 %1192
        %1194 = vrot.lane.b32.xlu0 %v1146, 21
        %v1195 = vpop.permute.xlu0 %1194
        %1196 = vrot.lane.b32.xlu0 %v1150, 21
        %v1197 = vpop.permute.xlu0 %1196
        %1198 = vrot.lane.b32.xlu0 %v1154, 21
        %v1199 = vpop.permute.xlu0 %1198
        %1200 = vrot.lane.b32.xlu0 %v1155, 21
        %v1201 = vpop.permute.xlu0 %1200
        %vm1202 = vcmask 1044480
        %v1203 = vrot.slane %v383, 3
        %v1204 = vrot.slane %v384, 3
        %v1205 = vsel %vm1202, %v1203, %v1204
        %v1206 = vrot.slane %v385, 3
        %v1207 = vsel %vm1202, %v1204, %v1206
        %v1208 = vrot.slane %v386, 3
        %v1209 = vsel %vm1202, %v1206, %v1208
        %v1210 = vrot.slane %v387, 3
        %v1211 = vsel %vm1202, %v1208, %v1210
        %v1212 = vrot.slane %v388, 3
        %v1213 = vsel %vm1202, %v1210, %v1212
        %v1214 = vrot.slane %v389, 3
        %v1215 = vsel %vm1202, %v1212, %v1214
        %v1216 = vrot.slane %v390, 3
        %v1217 = vsel %vm1202, %v1214, %v1216
        %v1218 = vrot.slane %v391, 3
        %v1219 = vsel %vm1202, %v1216, %v1218
        %v1220 = vrot.slane %v392, 3
        %v1221 = vsel %vm1202, %v1218, %v1220
        %v1222 = vrot.slane %v393, 3
        %v1223 = vsel %vm1202, %v1220, %v1222
        %v1224 = vrot.slane %v394, 3
        %v1225 = vsel %vm1202, %v1222, %v1224
        %v1226 = vrot.slane %v395, 3
        %v1227 = vsel %vm1202, %v1224, %v1226
        %v1228 = vrot.slane %v396, 3
        %v1229 = vsel %vm1202, %v1226, %v1228
        %v1230 = vrot.slane %v397, 3
        %v1231 = vsel %vm1202, %v1228, %v1230
        %v1232 = vrot.slane %v398, 3
        %v1233 = vsel %vm1202, %v1230, %v1232
        %v1234 = vrot.slane %v399, 3
        %v1235 = vsel %vm1202, %v1232, %v1234
        %v1236 = vrot.slane %v400, 3
        %v1237 = vsel %vm1202, %v1234, %v1236
        %v1238 = vrot.slane %v401, 3
        %v1239 = vsel %vm1202, %v1236, %v1238
        %v1240 = vrot.slane %v402, 3
        %v1241 = vsel %vm1202, %v1238, %v1240
        %v1242 = vrot.slane %v403, 3
        %v1243 = vsel %vm1202, %v1240, %v1242
        %v1244 = vrot.slane %v404, 3
        %v1245 = vsel %vm1202, %v1242, %v1244
        %v1246 = vrot.slane 0, 3
        %v1247 = vsel %vm1202, %v1244, %v1246
        %v1248 = vsel %vm1202, %v1246, %v1246
        %1249 = vrot.lane.b32.xlu0 %v1205, 24
        %v1250 = vpop.permute.xlu0 %1249
        %1251 = vrot.lane.b32.xlu0 %v1207, 24
        %v1252 = vpop.permute.xlu0 %1251
        %1253 = vrot.lane.b32.xlu0 %v1209, 24
        %v1254 = vpop.permute.xlu0 %1253
        %1255 = vrot.lane.b32.xlu0 %v1211, 24
        %v1256 = vpop.permute.xlu0 %1255
        %1257 = vrot.lane.b32.xlu0 %v1213, 24
        %v1258 = vpop.permute.xlu0 %1257
        %1259 = vrot.lane.b32.xlu0 %v1215, 24
        %v1260 = vpop.permute.xlu0 %1259
        %1261 = vrot.lane.b32.xlu0 %v1217, 24
        %v1262 = vpop.permute.xlu0 %1261
        %1263 = vrot.lane.b32.xlu0 %v1219, 24
        %v1264 = vpop.permute.xlu0 %1263
        %1265 = vrot.lane.b32.xlu0 %v1221, 24
        %v1266 = vpop.permute.xlu0 %1265
        %1267 = vrot.lane.b32.xlu0 %v1223, 24
        %v1268 = vpop.permute.xlu0 %1267
        %1269 = vrot.lane.b32.xlu0 %v1225, 24
        %v1270 = vpop.permute.xlu0 %1269
        %1271 = vrot.lane.b32.xlu0 %v1227, 24
        %v1272 = vpop.permute.xlu0 %1271
        %1273 = vrot.lane.b32.xlu0 %v1229, 24
        %v1274 = vpop.permute.xlu0 %1273
        %1275 = vrot.lane.b32.xlu0 %v1231, 24
        %v1276 = vpop.permute.xlu0 %1275
        %1277 = vrot.lane.b32.xlu0 %v1233, 24
        %v1278 = vpop.permute.xlu0 %1277
        %1279 = vrot.lane.b32.xlu0 %v1235, 24
        %v1280 = vpop.permute.xlu0 %1279
        %1281 = vrot.lane.b32.xlu0 %v1237, 24
        %v1282 = vpop.permute.xlu0 %1281
        %1283 = vrot.lane.b32.xlu0 %v1239, 24
        %v1284 = vpop.permute.xlu0 %1283
        %1285 = vrot.lane.b32.xlu0 %v1241, 24
        %v1286 = vpop.permute.xlu0 %1285
        %1287 = vrot.lane.b32.xlu0 %v1243, 24
        %v1288 = vpop.permute.xlu0 %1287
        %1289 = vrot.lane.b32.xlu0 %v1245, 24
        %v1290 = vpop.permute.xlu0 %1289
        %1291 = vrot.lane.b32.xlu0 %v1247, 24
        %v1292 = vpop.permute.xlu0 %1291
        %1293 = vrot.lane.b32.xlu0 %v1248, 24
        %v1294 = vpop.permute.xlu0 %1293
        %vm1295 = vcmask 23552
        %v1297 = vsel %vm1295, 0, %v592
        %v1299 = vsel %vm1295, %v408, %v594
        %v1301 = vsel %vm1295, %v383, %v596
        %v1303 = vsel %vm1295, %v384, %v598
        %v1305 = vsel %vm1295, %v385, %v600
        %v1307 = vsel %vm1295, %v386, %v602
        %v1309 = vsel %vm1295, %v387, %v604
        %v1311 = vsel %vm1295, %v388, %v606
        %v1313 = vsel %vm1295, %v389, %v608
        %v1315 = vsel %vm1295, %v390, %v610
        %v1317 = vsel %vm1295, %v391, %v612
        %v1319 = vsel %vm1295, %v392, %v614
        %v1321 = vsel %vm1295, %v393, %v616
        %v1323 = vsel %vm1295, %v394, %v618
        %v1325 = vsel %vm1295, %v395, %v620
        %v1327 = vsel %vm1295, %v396, %v622
        %v1329 = vsel %vm1295, %v397, %v624
        %v1331 = vsel %vm1295, %v398, %v626
        %v1333 = vsel %vm1295, %v399, %v628
        %v1335 = vsel %vm1295, %v400, %v630
        %v1337 = vsel %vm1295, %v401, %v632
        %v1339 = vsel %vm1295, %v402, %v634
        %v1341 = vsel %vm1295, %v403, %v636
        %vm1342 = vcmask 48128
        %v1344 = vsel %vm1342, %v1297, %v686
        %v1346 = vsel %vm1342, %v1299, %v688
        %v1348 = vsel %vm1342, %v1301, %v690
        %v1350 = vsel %vm1342, %v1303, %v692
        %v1352 = vsel %vm1342, %v1305, %v694
        %v1354 = vsel %vm1342, %v1307, %v696
        %v1356 = vsel %vm1342, %v1309, %v698
        %v1358 = vsel %vm1342, %v1311, %v700
        %v1360 = vsel %vm1342, %v1313, %v702
        %v1362 = vsel %vm1342, %v1315, %v704
        %v1364 = vsel %vm1342, %v1317, %v706
        %v1366 = vsel %vm1342, %v1319, %v708
        %v1368 = vsel %vm1342, %v1321, %v710
        %v1370 = vsel %vm1342, %v1323, %v712
        %v1372 = vsel %vm1342, %v1325, %v714
        %v1374 = vsel %vm1342, %v1327, %v716
        %v1376 = vsel %vm1342, %v1329, %v718
        %v1378 = vsel %vm1342, %v1331, %v720
        %v1380 = vsel %vm1342, %v1333, %v722
        %v1382 = vsel %vm1342, %v1335, %v724
        %v1384 = vsel %vm1342, %v1337, %v726
        %v1386 = vsel %vm1342, %v1339, %v728
        %v1388 = vsel %vm1342, %v1341, %v730
        %vm1389 = vcmask 72704
        %v1391 = vsel %vm1389, %v1344, %v734
        %v1393 = vsel %vm1389, %v1346, %v736
        %v1395 = vsel %vm1389, %v1348, %v738
        %v1397 = vsel %vm1389, %v1350, %v740
        %v1399 = vsel %vm1389, %v1352, %v742
        %v1401 = vsel %vm1389, %v1354, %v744
        %v1403 = vsel %vm1389, %v1356, %v746
        %v1405 = vsel %vm1389, %v1358, %v748
        %v1407 = vsel %vm1389, %v1360, %v750
        %v1409 = vsel %vm1389, %v1362, %v752
        %v1411 = vsel %vm1389, %v1364, %v754
        %v1413 = vsel %vm1389, %v1366, %v756
        %v1415 = vsel %vm1389, %v1368, %v758
        %v1417 = vsel %vm1389, %v1370, %v760
        %v1419 = vsel %vm1389, %v1372, %v762
        %v1421 = vsel %vm1389, %v1374, %v764
        %v1423 = vsel %vm1389, %v1376, %v766
        %v1425 = vsel %vm1389, %v1378, %v768
        %v1427 = vsel %vm1389, %v1380, %v770
        %v1429 = vsel %vm1389, %v1382, %v772
        %v1431 = vsel %vm1389, %v1384, %v774
        %v1433 = vsel %vm1389, %v1386, %v776
        %v1435 = vsel %vm1389, %v1388, %v778
        %vm1436 = vcmask 97280
        %v1438 = vsel %vm1436, %v1391, %v877
        %v1440 = vsel %vm1436, %v1393, %v879
        %v1442 = vsel %vm1436, %v1395, %v881
        %v1444 = vsel %vm1436, %v1397, %v883
        %v1446 = vsel %vm1436, %v1399, %v885
        %v1448 = vsel %vm1436, %v1401, %v887
        %v1450 = vsel %vm1436, %v1403, %v889
        %v1452 = vsel %vm1436, %v1405, %v891
        %v1454 = vsel %vm1436, %v1407, %v893
        %v1456 = vsel %vm1436, %v1409, %v895
        %v1458 = vsel %vm1436, %v1411, %v897
        %v1460 = vsel %vm1436, %v1413, %v899
        %v1462 = vsel %vm1436, %v1415, %v901
        %v1464 = vsel %vm1436, %v1417, %v903
        %v1466 = vsel %vm1436, %v1419, %v905
        %v1468 = vsel %vm1436, %v1421, %v907
        %v1470 = vsel %vm1436, %v1423, %v909
        %v1472 = vsel %vm1436, %v1425, %v911
        %v1474 = vsel %vm1436, %v1427, %v913
        %v1476 = vsel %vm1436, %v1429, %v915
        %v1478 = vsel %vm1436, %v1431, %v917
        %v1480 = vsel %vm1436, %v1433, %v919
        %v1482 = vsel %vm1436, %v1435, %v921
        %vm1483 = vcmask 121856
        %v1485 = vsel %vm1483, %v1438, %v971
        %v1487 = vsel %vm1483, %v1440, %v973
        %v1489 = vsel %vm1483, %v1442, %v975
        %v1491 = vsel %vm1483, %v1444, %v977
        %v1493 = vsel %vm1483, %v1446, %v979
        %v1495 = vsel %vm1483, %v1448, %v981
        %v1497 = vsel %vm1483, %v1450, %v983
        %v1499 = vsel %vm1483, %v1452, %v985
        %v1501 = vsel %vm1483, %v1454, %v987
        %v1503 = vsel %vm1483, %v1456, %v989
        %v1505 = vsel %vm1483, %v1458, %v991
        %v1507 = vsel %vm1483, %v1460, %v993
        %v1509 = vsel %vm1483, %v1462, %v995
        %v1511 = vsel %vm1483, %v1464, %v997
        %v1513 = vsel %vm1483, %v1466, %v999
        %v1515 = vsel %vm1483, %v1468, %v1001
        %v1517 = vsel %vm1483, %v1470, %v1003
        %v1519 = vsel %vm1483, %v1472, %v1005
        %v1521 = vsel %vm1483, %v1474, %v1007
        %v1523 = vsel %vm1483, %v1476, %v1009
        %v1525 = vsel %vm1483, %v1478, %v1011
        %v1527 = vsel %vm1483, %v1480, %v1013
        %v1529 = vsel %vm1483, %v1482, %v1015
        %vm1530 = vcmask 146432
        %v1532 = vsel %vm1530, %v1485, %v1018
        %v1534 = vsel %vm1530, %v1487, %v1020
        %v1536 = vsel %vm1530, %v1489, %v1022
        %v1538 = vsel %vm1530, %v1491, %v1024
        %v1540 = vsel %vm1530, %v1493, %v1026
        %v1542 = vsel %vm1530, %v1495, %v1028
        %v1544 = vsel %vm1530, %v1497, %v1030
        %v1546 = vsel %vm1530, %v1499, %v1032
        %v1548 = vsel %vm1530, %v1501, %v1034
        %v1550 = vsel %vm1530, %v1503, %v1036
        %v1552 = vsel %vm1530, %v1505, %v1038
        %v1554 = vsel %vm1530, %v1507, %v1040
        %v1556 = vsel %vm1530, %v1509, %v1042
        %v1558 = vsel %vm1530, %v1511, %v1044
        %v1560 = vsel %vm1530, %v1513, %v1046
        %v1562 = vsel %vm1530, %v1515, %v1048
        %v1564 = vsel %vm1530, %v1517, %v1050
        %v1566 = vsel %vm1530, %v1519, %v1052
        %v1568 = vsel %vm1530, %v1521, %v1054
        %v1570 = vsel %vm1530, %v1523, %v1056
        %v1572 = vsel %vm1530, %v1525, %v1058
        %v1574 = vsel %vm1530, %v1527, %v1060
        %v1576 = vsel %vm1530, %v1529, %v1062
        %vm1577 = vcmask 171008
        %v1579 = vsel %vm1577, %v1532, %v1157
        %v1581 = vsel %vm1577, %v1534, %v1159
        %v1583 = vsel %vm1577, %v1536, %v1161
        %v1585 = vsel %vm1577, %v1538, %v1163
        %v1587 = vsel %vm1577, %v1540, %v1165
        %v1589 = vsel %vm1577, %v1542, %v1167
        %v1591 = vsel %vm1577, %v1544, %v1169
        %v1593 = vsel %vm1577, %v1546, %v1171
        %v1595 = vsel %vm1577, %v1548, %v1173
        %v1597 = vsel %vm1577, %v1550, %v1175
        %v1599 = vsel %vm1577, %v1552, %v1177
        %v1601 = vsel %vm1577, %v1554, %v1179
        %v1603 = vsel %vm1577, %v1556, %v1181
        %v1605 = vsel %vm1577, %v1558, %v1183
        %v1607 = vsel %vm1577, %v1560, %v1185
        %v1609 = vsel %vm1577, %v1562, %v1187
        %v1611 = vsel %vm1577, %v1564, %v1189
        %v1613 = vsel %vm1577, %v1566, %v1191
        %v1615 = vsel %vm1577, %v1568, %v1193
        %v1617 = vsel %vm1577, %v1570, %v1195
        %v1619 = vsel %vm1577, %v1572, %v1197
        %v1621 = vsel %vm1577, %v1574, %v1199
        %v1623 = vsel %vm1577, %v1576, %v1201
        %vm1624 = vcmask 195584
        %v1626 = vsel %vm1624, %v1579, %v1250
        %v1628 = vsel %vm1624, %v1581, %v1252
        %v1630 = vsel %vm1624, %v1583, %v1254
        %v1632 = vsel %vm1624, %v1585, %v1256
        %v1634 = vsel %vm1624, %v1587, %v1258
        %v1636 = vsel %vm1624, %v1589, %v1260
        %v1638 = vsel %vm1624, %v1591, %v1262
        %v1640 = vsel %vm1624, %v1593, %v1264
        %v1642 = vsel %vm1624, %v1595, %v1266
        %v1644 = vsel %vm1624, %v1597, %v1268
        %v1646 = vsel %vm1624, %v1599, %v1270
        %v1648 = vsel %vm1624, %v1601, %v1272
        %v1650 = vsel %vm1624, %v1603, %v1274
        %v1652 = vsel %vm1624, %v1605, %v1276
        %v1654 = vsel %vm1624, %v1607, %v1278
        %v1656 = vsel %vm1624, %v1609, %v1280
        %v1658 = vsel %vm1624, %v1611, %v1282
        %v1660 = vsel %vm1624, %v1613, %v1284
        %v1662 = vsel %vm1624, %v1615, %v1286
        %v1664 = vsel %vm1624, %v1617, %v1288
        %v1666 = vsel %vm1624, %v1619, %v1290
        %v1668 = vsel %vm1624, %v1621, %v1292
        %v1670 = vsel %vm1624, %v1623, %v1294
        %v1672 = vperm.slane %v291, 0
        %v1674 = vshrl.u32 %v1626, 16
        %v1676 = vrot.slane %v1674, 2
        %v1677 = vshll.u32 %v1626, 16
        %v1679 = vrot.slane %v1677, 3
        %v1680 = vor.u32 %v1676, %v1679
        %v1681 = vshrl.u32 %v1628, 16
        %v1683 = vrot.slane %v1681, 2
        %v1684 = vshll.u32 %v1628, 16
        %v1686 = vrot.slane %v1684, 3
        %v1687 = vor.u32 %v1683, %v1686
        %v1688 = vsel %vm1063, %v1680, %v1687
        %v1689 = vshrl.u32 %v1630, 16
        %v1691 = vrot.slane %v1689, 2
        %v1692 = vshll.u32 %v1630, 16
        %v1694 = vrot.slane %v1692, 3
        %v1695 = vor.u32 %v1691, %v1694
        %v1696 = vsel %vm1063, %v1687, %v1695
        %v1697 = vshrl.u32 %v1632, 16
        %v1699 = vrot.slane %v1697, 2
        %v1700 = vshll.u32 %v1632, 16
        %v1702 = vrot.slane %v1700, 3
        %v1703 = vor.u32 %v1699, %v1702
        %v1704 = vsel %vm1063, %v1695, %v1703
        %v1705 = vshrl.u32 %v1634, 16
        %v1707 = vrot.slane %v1705, 2
        %v1708 = vshll.u32 %v1634, 16
        %v1710 = vrot.slane %v1708, 3
        %v1711 = vor.u32 %v1707, %v1710
        %v1712 = vsel %vm1063, %v1703, %v1711
        %v1713 = vshrl.u32 %v1636, 16
        %v1715 = vrot.slane %v1713, 2
        %v1716 = vshll.u32 %v1636, 16
        %v1718 = vrot.slane %v1716, 3
        %v1719 = vor.u32 %v1715, %v1718
        %v1720 = vsel %vm1063, %v1711, %v1719
        %v1721 = vshrl.u32 %v1638, 16
        %v1723 = vrot.slane %v1721, 2
        %v1724 = vshll.u32 %v1638, 16
        %v1726 = vrot.slane %v1724, 3
        %v1727 = vor.u32 %v1723, %v1726
        %v1728 = vsel %vm1063, %v1719, %v1727
        %v1729 = vshrl.u32 %v1640, 16
        %v1731 = vrot.slane %v1729, 2
        %v1732 = vshll.u32 %v1640, 16
        %v1734 = vrot.slane %v1732, 3
        %v1735 = vor.u32 %v1731, %v1734
        %v1736 = vsel %vm1063, %v1727, %v1735
        %v1737 = vshrl.u32 %v1642, 16
        %v1739 = vrot.slane %v1737, 2
        %v1740 = vshll.u32 %v1642, 16
        %v1742 = vrot.slane %v1740, 3
        %v1743 = vor.u32 %v1739, %v1742
        %v1744 = vsel %vm1063, %v1735, %v1743
        %v1745 = vshrl.u32 %v1644, 16
        %v1747 = vrot.slane %v1745, 2
        %v1748 = vshll.u32 %v1644, 16
        %v1750 = vrot.slane %v1748, 3
        %v1751 = vor.u32 %v1747, %v1750
        %v1752 = vsel %vm1063, %v1743, %v1751
        %v1753 = vshrl.u32 %v1646, 16
        %v1755 = vrot.slane %v1753, 2
        %v1756 = vshll.u32 %v1646, 16
        %v1758 = vrot.slane %v1756, 3
        %v1759 = vor.u32 %v1755, %v1758
        %v1760 = vsel %vm1063, %v1751, %v1759
        %v1761 = vshrl.u32 %v1648, 16
        %v1763 = vrot.slane %v1761, 2
        %v1764 = vshll.u32 %v1648, 16
        %v1766 = vrot.slane %v1764, 3
        %v1767 = vor.u32 %v1763, %v1766
        %v1768 = vsel %vm1063, %v1759, %v1767
        %v1769 = vshrl.u32 %v1650, 16
        %v1771 = vrot.slane %v1769, 2
        %v1772 = vshll.u32 %v1650, 16
        %v1774 = vrot.slane %v1772, 3
        %v1775 = vor.u32 %v1771, %v1774
        %v1776 = vsel %vm1063, %v1767, %v1775
        %v1777 = vshrl.u32 %v1652, 16
        %v1779 = vrot.slane %v1777, 2
        %v1780 = vshll.u32 %v1652, 16
        %v1782 = vrot.slane %v1780, 3
        %v1783 = vor.u32 %v1779, %v1782
        %v1784 = vsel %vm1063, %v1775, %v1783
        %v1785 = vshrl.u32 %v1654, 16
        %v1787 = vrot.slane %v1785, 2
        %v1788 = vshll.u32 %v1654, 16
        %v1790 = vrot.slane %v1788, 3
        %v1791 = vor.u32 %v1787, %v1790
        %v1792 = vsel %vm1063, %v1783, %v1791
        %v1793 = vshrl.u32 %v1656, 16
        %v1795 = vrot.slane %v1793, 2
        %v1796 = vshll.u32 %v1656, 16
        %v1798 = vrot.slane %v1796, 3
        %v1799 = vor.u32 %v1795, %v1798
        %v1800 = vsel %vm1063, %v1791, %v1799
        %v1801 = vshrl.u32 %v1658, 16
        %v1803 = vrot.slane %v1801, 2
        %v1804 = vshll.u32 %v1658, 16
        %v1806 = vrot.slane %v1804, 3
        %v1807 = vor.u32 %v1803, %v1806
        %v1808 = vsel %vm1063, %v1799, %v1807
        %v1809 = vshrl.u32 %v1660, 16
        %v1811 = vrot.slane %v1809, 2
        %v1812 = vshll.u32 %v1660, 16
        %v1814 = vrot.slane %v1812, 3
        %v1815 = vor.u32 %v1811, %v1814
        %v1816 = vsel %vm1063, %v1807, %v1815
        %v1817 = vshrl.u32 %v1662, 16
        %v1819 = vrot.slane %v1817, 2
        %v1820 = vshll.u32 %v1662, 16
        %v1822 = vrot.slane %v1820, 3
        %v1823 = vor.u32 %v1819, %v1822
        %v1824 = vsel %vm1063, %v1815, %v1823
        %v1825 = vshrl.u32 %v1664, 16
        %v1827 = vrot.slane %v1825, 2
        %v1828 = vshll.u32 %v1664, 16
        %v1830 = vrot.slane %v1828, 3
        %v1831 = vor.u32 %v1827, %v1830
        %v1832 = vsel %vm1063, %v1823, %v1831
        %v1833 = vshrl.u32 %v1666, 16
        %v1835 = vrot.slane %v1833, 2
        %v1836 = vshll.u32 %v1666, 16
        %v1838 = vrot.slane %v1836, 3
        %v1839 = vor.u32 %v1835, %v1838
        %v1840 = vsel %vm1063, %v1831, %v1839
        %v1841 = vshrl.u32 %v1668, 16
        %v1843 = vrot.slane %v1841, 2
        %v1844 = vshll.u32 %v1668, 16
        %v1846 = vrot.slane %v1844, 3
        %v1847 = vor.u32 %v1843, %v1846
        %v1848 = vsel %vm1063, %v1839, %v1847
        %v1849 = vshrl.u32 %v1670, 16
        %v1851 = vrot.slane %v1849, 2
        %v1852 = vshll.u32 %v1670, 16
        %v1854 = vrot.slane %v1852, 3
        %v1855 = vor.u32 %v1851, %v1854
        %v1856 = vsel %vm1063, %v1847, %v1855
        %v1861 = vunpack.c.l.b16 %v287
        %v1862 = vunpack.c.l.b16 %v288
        %v1863 = vunpack.c.l.b16 %v289
        %v1864 = vunpack.c.l.b16 %v290
        %v1865 = vpack.c.b16 %v1862, %v1861
        %v1866 = vpack.c.b16 %v1864, %v1863
        %vm1868 = vcmask 220160
        %v1870 = vsel %vm1868, %v1688, 0
        %v1873 = vsel %vm1868, %v1696, 0
        %v1876 = vsel %vm1868, %v1704, 0
        %v1879 = vsel %vm1868, %v1712, 0
        %v1882 = vsel %vm1868, %v1720, 0
        %v1885 = vsel %vm1868, %v1728, 0
        %v1888 = vsel %vm1868, %v1736, 0
        %v1891 = vsel %vm1868, %v1744, 0
        %v1894 = vsel %vm1868, %v1752, 0
        %v1897 = vsel %vm1868, %v1760, 0
        %v1900 = vsel %vm1868, %v1768, 0
        %v1903 = vsel %vm1868, %v1776, 0
        %v1906 = vsel %vm1868, %v1784, 0
        %v1909 = vsel %vm1868, %v1792, 0
        %v1912 = vsel %vm1868, %v1800, 0
        %v1915 = vsel %vm1868, %v1808, 0
        %v1918 = vsel %vm1868, %v1816, 0
        %v1921 = vsel %vm1868, %v1824, 0
        %v1924 = vsel %vm1868, %v1832, 0
        %v1927 = vsel %vm1868, %v1840, 0
        %v1930 = vsel %vm1868, %v1848, 0
        %v1933 = vsel %vm1868, %v1856, 0
        %v1936 = vsel %vm1868, %v1855, 0
        %vm1938 = vcmask 1044480
        %vm1939 = vcmask 1045504
        %v1940 = vsel %vm1938, 4294967295, 65535
        %v1941 = vsel %vm1939, %v1940, 0
        %v1943 = vand.u32 %v1866, %v1941
        %1945 = vmatpush.bf16.msra.mxu0 0
        %1946 = vmatpush.bf16.msra.mxu0 0
        %1947 = vmatpush.bf16.msra.mxu0 0
        %1948 = vmatpush.bf16.msra.mxu0 0
        %1949 = vmatpush.bf16.msra.mxu0 0
        %1950 = vmatpush.bf16.msra.mxu0 0
        %1951 = vmatpush.bf16.msra.mxu0 %v1943
        %1952 = vmatpush.bf16.msra.mxu0 %v1865
        %1953 = vmatmul.bf16.gmra.mxu0 %v1870
        %v1954 = vpop.f32.mrf.mxu0
        %v1955 = vadd.f32 %v1672, %v1954
        %v1956 = vpop.f32.mrf.mxu0
        %v1957 = vadd.f32 %v1672, %v1956
        %1958 = vmatmul.bf16.gmra.mxu0 %v1873
        %v1959 = vpop.f32.mrf.mxu0
        %v1960 = vadd.f32 %v1672, %v1959
        %v1961 = vpop.f32.mrf.mxu0
        %v1962 = vadd.f32 %v1672, %v1961
        %1963 = vmatmul.bf16.gmra.mxu0 %v1876
        %v1964 = vpop.f32.mrf.mxu0
        %v1965 = vadd.f32 %v1672, %v1964
        %v1966 = vpop.f32.mrf.mxu0
        %v1967 = vadd.f32 %v1672, %v1966
        %1968 = vmatmul.bf16.gmra.mxu0 %v1879
        %v1969 = vpop.f32.mrf.mxu0
        %v1970 = vadd.f32 %v1672, %v1969
        %v1971 = vpop.f32.mrf.mxu0
        %v1972 = vadd.f32 %v1672, %v1971
        %1973 = vmatmul.bf16.gmra.mxu0 %v1882
        %v1974 = vpop.f32.mrf.mxu0
        %v1975 = vadd.f32 %v1672, %v1974
        %v1976 = vpop.f32.mrf.mxu0
        %v1977 = vadd.f32 %v1672, %v1976
        %1978 = vmatmul.bf16.gmra.mxu0 %v1885
        %v1979 = vpop.f32.mrf.mxu0
        %v1980 = vadd.f32 %v1672, %v1979
        %v1981 = vpop.f32.mrf.mxu0
        %v1982 = vadd.f32 %v1672, %v1981
        %1983 = vmatmul.bf16.gmra.mxu0 %v1888
        %v1984 = vpop.f32.mrf.mxu0
        %v1985 = vadd.f32 %v1672, %v1984
        %v1986 = vpop.f32.mrf.mxu0
        %v1987 = vadd.f32 %v1672, %v1986
        %1988 = vmatmul.bf16.gmra.mxu0 %v1891
        %v1989 = vpop.f32.mrf.mxu0
        %v1990 = vadd.f32 %v1672, %v1989
        %v1991 = vpop.f32.mrf.mxu0
        %v1992 = vadd.f32 %v1672, %v1991
        %1993 = vmatmul.bf16.gmra.mxu0 %v1894
        %v1994 = vpop.f32.mrf.mxu0
        %v1995 = vadd.f32 %v1672, %v1994
        %v1996 = vpop.f32.mrf.mxu0
        %v1997 = vadd.f32 %v1672, %v1996
        %1998 = vmatmul.bf16.gmra.mxu0 %v1897
        %v1999 = vpop.f32.mrf.mxu0
        %v2000 = vadd.f32 %v1672, %v1999
        %v2001 = vpop.f32.mrf.mxu0
        %v2002 = vadd.f32 %v1672, %v2001
        %2003 = vmatmul.bf16.gmra.mxu0 %v1900
        %v2004 = vpop.f32.mrf.mxu0
        %v2005 = vadd.f32 %v1672, %v2004
        %v2006 = vpop.f32.mrf.mxu0
        %v2007 = vadd.f32 %v1672, %v2006
        %2008 = vmatmul.bf16.gmra.mxu0 %v1903
        %v2009 = vpop.f32.mrf.mxu0
        %v2010 = vadd.f32 %v1672, %v2009
        %v2011 = vpop.f32.mrf.mxu0
        %v2012 = vadd.f32 %v1672, %v2011
        %2013 = vmatmul.bf16.gmra.mxu0 %v1906
        %v2014 = vpop.f32.mrf.mxu0
        %v2015 = vadd.f32 %v1672, %v2014
        %v2016 = vpop.f32.mrf.mxu0
        %v2017 = vadd.f32 %v1672, %v2016
        %2018 = vmatmul.bf16.gmra.mxu0 %v1909
        %v2019 = vpop.f32.mrf.mxu0
        %v2020 = vadd.f32 %v1672, %v2019
        %v2021 = vpop.f32.mrf.mxu0
        %v2022 = vadd.f32 %v1672, %v2021
        %2023 = vmatmul.bf16.gmra.mxu0 %v1912
        %v2024 = vpop.f32.mrf.mxu0
        %v2025 = vadd.f32 %v1672, %v2024
        %v2026 = vpop.f32.mrf.mxu0
        %v2027 = vadd.f32 %v1672, %v2026
        %2028 = vmatmul.bf16.gmra.mxu0 %v1915
        %v2029 = vpop.f32.mrf.mxu0
        %v2030 = vadd.f32 %v1672, %v2029
        %v2031 = vpop.f32.mrf.mxu0
        %v2032 = vadd.f32 %v1672, %v2031
        %2033 = vmatmul.bf16.gmra.mxu0 %v1918
        %v2034 = vpop.f32.mrf.mxu0
        %v2035 = vadd.f32 %v1672, %v2034
        %v2036 = vpop.f32.mrf.mxu0
        %v2037 = vadd.f32 %v1672, %v2036
        %2038 = vmatmul.bf16.gmra.mxu0 %v1921
        %v2039 = vpop.f32.mrf.mxu0
        %v2040 = vadd.f32 %v1672, %v2039
        %v2041 = vpop.f32.mrf.mxu0
        %v2042 = vadd.f32 %v1672, %v2041
        %2043 = vmatmul.bf16.gmra.mxu0 %v1924
        %v2044 = vpop.f32.mrf.mxu0
        %v2045 = vadd.f32 %v1672, %v2044
        %v2046 = vpop.f32.mrf.mxu0
        %v2047 = vadd.f32 %v1672, %v2046
        %2048 = vmatmul.bf16.gmra.mxu0 %v1927
        %v2049 = vpop.f32.mrf.mxu0
        %v2050 = vadd.f32 %v1672, %v2049
        %v2051 = vpop.f32.mrf.mxu0
        %v2052 = vadd.f32 %v1672, %v2051
        %2053 = vmatmul.bf16.gmra.mxu0 %v1930
        %v2054 = vpop.f32.mrf.mxu0
        %v2055 = vadd.f32 %v1672, %v2054
        %v2056 = vpop.f32.mrf.mxu0
        %v2057 = vadd.f32 %v1672, %v2056
        %2058 = vmatmul.bf16.gmra.mxu0 %v1933
        %v2059 = vpop.f32.mrf.mxu0
        %v2060 = vadd.f32 %v1672, %v2059
        %v2061 = vpop.f32.mrf.mxu0
        %v2062 = vadd.f32 %v1672, %v2061
        %2063 = vmatmul.bf16.gmra.mxu0 %v1936
        %v2064 = vpop.f32.mrf.mxu0
        %v2065 = vadd.f32 %v1672, %v2064
        %v2066 = vpop.f32.mrf.mxu0
        %2067 = vdwg.mxu0
        %v2068 = vmax.f32 %v1955, 0.0
        %v2069 = vmax.f32 %v1957, 0.0
        %v2070 = vmax.f32 %v1960, 0.0
        %v2071 = vmax.f32 %v1962, 0.0
        %v2072 = vmax.f32 %v1965, 0.0
        %v2073 = vmax.f32 %v1967, 0.0
        %v2074 = vmax.f32 %v1970, 0.0
        %v2075 = vmax.f32 %v1972, 0.0
        %v2076 = vmax.f32 %v1975, 0.0
        %v2077 = vmax.f32 %v1977, 0.0
        %v2078 = vmax.f32 %v1980, 0.0
        %v2079 = vmax.f32 %v1982, 0.0
        %v2080 = vmax.f32 %v1985, 0.0
        %v2081 = vmax.f32 %v1987, 0.0
        %v2082 = vmax.f32 %v1990, 0.0
        %v2083 = vmax.f32 %v1992, 0.0
        %v2084 = vmax.f32 %v1995, 0.0
        %v2085 = vmax.f32 %v1997, 0.0
        %v2086 = vmax.f32 %v2000, 0.0
        %v2087 = vmax.f32 %v2002, 0.0
        %v2088 = vmax.f32 %v2005, 0.0
        %v2089 = vmax.f32 %v2007, 0.0
        %v2090 = vmax.f32 %v2010, 0.0
        %v2091 = vmax.f32 %v2012, 0.0
        %v2092 = vmax.f32 %v2015, 0.0
        %v2093 = vmax.f32 %v2017, 0.0
        %v2094 = vmax.f32 %v2020, 0.0
        %v2095 = vmax.f32 %v2022, 0.0
        %v2096 = vmax.f32 %v2025, 0.0
        %v2097 = vmax.f32 %v2027, 0.0
        %v2098 = vmax.f32 %v2030, 0.0
        %v2099 = vmax.f32 %v2032, 0.0
        %v2100 = vmax.f32 %v2035, 0.0
        %v2101 = vmax.f32 %v2037, 0.0
        %v2102 = vmax.f32 %v2040, 0.0
        %v2103 = vmax.f32 %v2042, 0.0
        %v2104 = vmax.f32 %v2045, 0.0
        %v2105 = vmax.f32 %v2047, 0.0
        %v2106 = vmax.f32 %v2050, 0.0
        %v2107 = vmax.f32 %v2052, 0.0
        %v2108 = vmax.f32 %v2055, 0.0
        %v2109 = vmax.f32 %v2057, 0.0
        %v2110 = vmax.f32 %v2060, 0.0
        %v2111 = vmax.f32 %v2062, 0.0
        %v2112 = vmax.f32 %v2065, 0.0
        %2114 = vset.pattern.permute.xlu0 0
        %2115 = vperm.xlu0 %2114, %v197
        %v2116 = vpop.permute.xlu0 %2115
        %2119 = vset.pattern.permute.xlu0 0
        %2120 = vperm.xlu0 %2119, %v198
        %v2121 = vpop.permute.xlu0 %2120
        %2124 = vset.pattern.permute.xlu0 0
        %2125 = vperm.xlu0 %2124, %v199
        %v2126 = vpop.permute.xlu0 %2125
        %2129 = vset.pattern.permute.xlu0 0
        %2130 = vperm.xlu0 %2129, %v200
        %v2131 = vpop.permute.xlu0 %2130
        %2134 = vset.pattern.permute.xlu0 0
        %2135 = vperm.xlu0 %2134, %v201
        %v2136 = vpop.permute.xlu0 %2135
        %2139 = vset.pattern.permute.xlu0 0
        %2140 = vperm.xlu0 %2139, %v202
        %v2141 = vpop.permute.xlu0 %2140
        %2144 = vset.pattern.permute.xlu0 0
        %2145 = vperm.xlu0 %2144, %v203
        %v2146 = vpop.permute.xlu0 %2145
        %2149 = vset.pattern.permute.xlu0 0
        %2150 = vperm.xlu0 %2149, %v204
        %v2151 = vpop.permute.xlu0 %2150
        %2154 = vset.pattern.permute.xlu0 0
        %2155 = vperm.xlu0 %2154, %v205
        %v2156 = vpop.permute.xlu0 %2155
        %2159 = vset.pattern.permute.xlu0 0
        %2160 = vperm.xlu0 %2159, %v206
        %v2161 = vpop.permute.xlu0 %2160
        %2164 = vset.pattern.permute.xlu0 0
        %2165 = vperm.xlu0 %2164, %v207
        %v2166 = vpop.permute.xlu0 %2165
        %2169 = vset.pattern.permute.xlu0 0
        %2170 = vperm.xlu0 %2169, %v208
        %v2171 = vpop.permute.xlu0 %2170
        %2174 = vset.pattern.permute.xlu0 0
        %2175 = vperm.xlu0 %2174, %v209
        %v2176 = vpop.permute.xlu0 %2175
        %2179 = vset.pattern.permute.xlu0 0
        %2180 = vperm.xlu0 %2179, %v210
        %v2181 = vpop.permute.xlu0 %2180
        %2184 = vset.pattern.permute.xlu0 0
        %2185 = vperm.xlu0 %2184, %v211
        %v2186 = vpop.permute.xlu0 %2185
        %2189 = vset.pattern.permute.xlu0 0
        %2190 = vperm.xlu0 %2189, %v212
        %v2191 = vpop.permute.xlu0 %2190
        %2194 = vset.pattern.permute.xlu0 0
        %2195 = vperm.xlu0 %2194, %v213
        %v2196 = vpop.permute.xlu0 %2195
        %2199 = vset.pattern.permute.xlu0 0
        %2200 = vperm.xlu0 %2199, %v214
        %v2201 = vpop.permute.xlu0 %2200
        %2204 = vset.pattern.permute.xlu0 0
        %2205 = vperm.xlu0 %2204, %v215
        %v2206 = vpop.permute.xlu0 %2205
        %2209 = vset.pattern.permute.xlu0 0
        %2210 = vperm.xlu0 %2209, %v216
        %v2211 = vpop.permute.xlu0 %2210
        %2214 = vset.pattern.permute.xlu0 0
        %2215 = vperm.xlu0 %2214, %v217
        %v2216 = vpop.permute.xlu0 %2215
        %2219 = vset.pattern.permute.xlu0 0
        %2220 = vperm.xlu0 %2219, %v218
        %v2221 = vpop.permute.xlu0 %2220
        %2224 = vset.pattern.permute.xlu0 0
        %2225 = vperm.xlu0 %2224, %v219
        %v2226 = vpop.permute.xlu0 %2225
        %2229 = vset.pattern.permute.xlu0 0
        %2230 = vperm.xlu0 %2229, %v220
        %v2231 = vpop.permute.xlu0 %2230
        %2234 = vset.pattern.permute.xlu0 0
        %2235 = vperm.xlu0 %2234, %v221
        %v2236 = vpop.permute.xlu0 %2235
        %2239 = vset.pattern.permute.xlu0 0
        %2240 = vperm.xlu0 %2239, %v222
        %v2241 = vpop.permute.xlu0 %2240
        %2244 = vset.pattern.permute.xlu0 0
        %2245 = vperm.xlu0 %2244, %v223
        %v2246 = vpop.permute.xlu0 %2245
        %2249 = vset.pattern.permute.xlu0 0
        %2250 = vperm.xlu0 %2249, %v224
        %v2251 = vpop.permute.xlu0 %2250
        %2254 = vset.pattern.permute.xlu0 0
        %2255 = vperm.xlu0 %2254, %v225
        %v2256 = vpop.permute.xlu0 %2255
        %2259 = vset.pattern.permute.xlu0 0
        %2260 = vperm.xlu0 %2259, %v226
        %v2261 = vpop.permute.xlu0 %2260
        %2264 = vset.pattern.permute.xlu0 0
        %2265 = vperm.xlu0 %2264, %v227
        %v2266 = vpop.permute.xlu0 %2265
        %2269 = vset.pattern.permute.xlu0 0
        %2270 = vperm.xlu0 %2269, %v228
        %v2271 = vpop.permute.xlu0 %2270
        %2274 = vset.pattern.permute.xlu0 0
        %2275 = vperm.xlu0 %2274, %v229
        %v2276 = vpop.permute.xlu0 %2275
        %2279 = vset.pattern.permute.xlu0 0
        %2280 = vperm.xlu0 %2279, %v230
        %v2281 = vpop.permute.xlu0 %2280
        %2284 = vset.pattern.permute.xlu0 0
        %2285 = vperm.xlu0 %2284, %v231
        %v2286 = vpop.permute.xlu0 %2285
        %2289 = vset.pattern.permute.xlu0 0
        %2290 = vperm.xlu0 %2289, %v232
        %v2291 = vpop.permute.xlu0 %2290
        %2294 = vset.pattern.permute.xlu0 0
        %2295 = vperm.xlu0 %2294, %v233
        %v2296 = vpop.permute.xlu0 %2295
        %2299 = vset.pattern.permute.xlu0 0
        %2300 = vperm.xlu0 %2299, %v234
        %v2301 = vpop.permute.xlu0 %2300
        %2304 = vset.pattern.permute.xlu0 0
        %2305 = vperm.xlu0 %2304, %v235
        %v2306 = vpop.permute.xlu0 %2305
        %2309 = vset.pattern.permute.xlu0 0
        %2310 = vperm.xlu0 %2309, %v236
        %v2311 = vpop.permute.xlu0 %2310
        %2314 = vset.pattern.permute.xlu0 0
        %2315 = vperm.xlu0 %2314, %v237
        %v2316 = vpop.permute.xlu0 %2315
        %2319 = vset.pattern.permute.xlu0 0
        %2320 = vperm.xlu0 %2319, %v238
        %v2321 = vpop.permute.xlu0 %2320
        %2324 = vset.pattern.permute.xlu0 0
        %2325 = vperm.xlu0 %2324, %v239
        %v2326 = vpop.permute.xlu0 %2325
        %2329 = vset.pattern.permute.xlu0 0
        %2330 = vperm.xlu0 %2329, %v240
        %v2331 = vpop.permute.xlu0 %2330
        %2334 = vset.pattern.permute.xlu0 0
        %2335 = vperm.xlu0 %2334, %v241
        %v2336 = vpop.permute.xlu0 %2335
        %v2338 = vmul.f32 %v2068, %v2116
        %v2339 = vmul.f32 %v2069, %v2121
        %v2340 = vmul.f32 %v2070, %v2126
        %v2341 = vmul.f32 %v2071, %v2131
        %v2342 = vmul.f32 %v2072, %v2136
        %v2343 = vmul.f32 %v2073, %v2141
        %v2344 = vmul.f32 %v2074, %v2146
        %v2345 = vmul.f32 %v2075, %v2151
        %v2346 = vmul.f32 %v2076, %v2156
        %v2347 = vmul.f32 %v2077, %v2161
        %v2348 = vmul.f32 %v2078, %v2166
        %v2349 = vmul.f32 %v2079, %v2171
        %v2350 = vmul.f32 %v2080, %v2176
        %v2351 = vmul.f32 %v2081, %v2181
        %v2352 = vmul.f32 %v2082, %v2186
        %v2353 = vmul.f32 %v2083, %v2191
        %v2354 = vmul.f32 %v2084, %v2196
        %v2355 = vmul.f32 %v2085, %v2201
        %v2356 = vmul.f32 %v2086, %v2206
        %v2357 = vmul.f32 %v2087, %v2211
        %v2358 = vmul.f32 %v2088, %v2216
        %v2359 = vmul.f32 %v2089, %v2221
        %v2360 = vmul.f32 %v2090, %v2226
        %v2361 = vmul.f32 %v2091, %v2231
        %v2362 = vmul.f32 %v2092, %v2236
        %v2363 = vmul.f32 %v2093, %v2241
        %v2364 = vmul.f32 %v2094, %v2246
        %v2365 = vmul.f32 %v2095, %v2251
        %v2366 = vmul.f32 %v2096, %v2256
        %v2367 = vmul.f32 %v2097, %v2261
        %v2368 = vmul.f32 %v2098, %v2266
        %v2369 = vmul.f32 %v2099, %v2271
        %v2370 = vmul.f32 %v2100, %v2276
        %v2371 = vmul.f32 %v2101, %v2281
        %v2372 = vmul.f32 %v2102, %v2286
        %v2373 = vmul.f32 %v2103, %v2291
        %v2374 = vmul.f32 %v2104, %v2296
        %v2375 = vmul.f32 %v2105, %v2301
        %v2376 = vmul.f32 %v2106, %v2306
        %v2377 = vmul.f32 %v2107, %v2311
        %v2378 = vmul.f32 %v2108, %v2316
        %v2379 = vmul.f32 %v2109, %v2321
        %v2380 = vmul.f32 %v2110, %v2326
        %v2381 = vmul.f32 %v2111, %v2331
        %v2382 = vmul.f32 %v2112, %v2336
        %v2383 = vpack.c.bf16 %v2338, %v2338
        %v2384 = vpack.c.bf16 %v2339, %v2339
        %v2385 = vpack.c.bf16 %v2340, %v2340
        %v2386 = vpack.c.bf16 %v2341, %v2341
        %v2387 = vpack.c.bf16 %v2342, %v2342
        %v2388 = vpack.c.bf16 %v2343, %v2343
        %v2389 = vpack.c.bf16 %v2344, %v2344
        %v2390 = vpack.c.bf16 %v2345, %v2345
        %v2391 = vpack.c.bf16 %v2346, %v2346
        %v2392 = vpack.c.bf16 %v2347, %v2347
        %v2393 = vpack.c.bf16 %v2348, %v2348
        %v2394 = vpack.c.bf16 %v2349, %v2349
        %v2395 = vpack.c.bf16 %v2350, %v2350
        %v2396 = vpack.c.bf16 %v2351, %v2351
        %v2397 = vpack.c.bf16 %v2352, %v2352
        %v2398 = vpack.c.bf16 %v2353, %v2353
        %v2399 = vpack.c.bf16 %v2354, %v2354
        %v2400 = vpack.c.bf16 %v2355, %v2355
        %v2401 = vpack.c.bf16 %v2356, %v2356
        %v2402 = vpack.c.bf16 %v2357, %v2357
        %v2403 = vpack.c.bf16 %v2358, %v2358
        %v2404 = vpack.c.bf16 %v2359, %v2359
        %v2405 = vpack.c.bf16 %v2360, %v2360
        %v2406 = vpack.c.bf16 %v2361, %v2361
        %v2407 = vpack.c.bf16 %v2362, %v2362
        %v2408 = vpack.c.bf16 %v2363, %v2363
        %v2409 = vpack.c.bf16 %v2364, %v2364
        %v2410 = vpack.c.bf16 %v2365, %v2365
        %v2411 = vpack.c.bf16 %v2366, %v2366
        %v2412 = vpack.c.bf16 %v2367, %v2367
        %v2413 = vpack.c.bf16 %v2368, %v2368
        %v2414 = vpack.c.bf16 %v2369, %v2369
        %v2415 = vpack.c.bf16 %v2370, %v2370
        %v2416 = vpack.c.bf16 %v2371, %v2371
        %v2417 = vpack.c.bf16 %v2372, %v2372
        %v2418 = vpack.c.bf16 %v2373, %v2373
        %v2419 = vpack.c.bf16 %v2374, %v2374
        %v2420 = vpack.c.bf16 %v2375, %v2375
        %v2421 = vpack.c.bf16 %v2376, %v2376
        %v2422 = vpack.c.bf16 %v2377, %v2377
        %v2423 = vpack.c.bf16 %v2378, %v2378
        %v2424 = vpack.c.bf16 %v2379, %v2379
        %v2425 = vpack.c.bf16 %v2380, %v2380
        %v2426 = vpack.c.bf16 %v2381, %v2381
        %v2427 = vpack.c.bf16 %v2382, %v2382
        %2428 = vst [vmem:[%s190] sm:$0xf] %v2383
        %2429 = vst [vmem:[%s190 + $0x4] sm:$0xf] %v2384
        %2430 = vst [vmem:[%s190 + $0x8] sm:$0xf] %v2385
        %2431 = vst [vmem:[%s190 + $0xc] sm:$0xf] %v2386
        %2432 = vst [vmem:[%s190 + $0x10] sm:$0xf] %v2387
        %2433 = vst [vmem:[%s190 + $0x14] sm:$0xf] %v2388
        %2434 = vst [vmem:[%s190 + $0x18] sm:$0xf] %v2389
        %2435 = vst [vmem:[%s190 + $0x1c] sm:$0xf] %v2390
        %2436 = vst [vmem:[%s190 + $0x20] sm:$0xf] %v2391
        %2437 = vst [vmem:[%s190 + $0x24] sm:$0xf] %v2392
        %2438 = vst [vmem:[%s190 + $0x28] sm:$0xf] %v2393
        %2439 = vst [vmem:[%s190 + $0x2c] sm:$0xf] %v2394
        %2440 = vst [vmem:[%s190 + $0x30] sm:$0xf] %v2395
        %2441 = vst [vmem:[%s190 + $0x34] sm:$0xf] %v2396
        %2442 = vst [vmem:[%s190 + $0x38] sm:$0xf] %v2397
        %2443 = vst [vmem:[%s190 + $0x3c] sm:$0xf] %v2398
        %2444 = vst [vmem:[%s190 + $0x40] sm:$0xf] %v2399
        %2445 = vst [vmem:[%s190 + $0x44] sm:$0xf] %v2400
        %2446 = vst [vmem:[%s190 + $0x48] sm:$0xf] %v2401
        %2447 = vst [vmem:[%s190 + $0x4c] sm:$0xf] %v2402
        %2448 = vst [vmem:[%s190 + $0x50] sm:$0xf] %v2403
        %2449 = vst [vmem:[%s190 + $0x54] sm:$0xf] %v2404
        %2450 = vst [vmem:[%s190 + $0x58] sm:$0xf] %v2405
        %2451 = vst [vmem:[%s190 + $0x5c] sm:$0xf] %v2406
        %2452 = vst [vmem:[%s190 + $0x60] sm:$0xf] %v2407
        %2453 = vst [vmem:[%s190 + $0x64] sm:$0xf] %v2408
        %2454 = vst [vmem:[%s190 + $0x68] sm:$0xf] %v2409
        %2455 = vst [vmem:[%s190 + $0x6c] sm:$0xf] %v2410
        %2456 = vst [vmem:[%s190 + $0x70] sm:$0xf] %v2411
        %2457 = vst [vmem:[%s190 + $0x74] sm:$0xf] %v2412
        %2458 = vst [vmem:[%s190 + $0x78] sm:$0xf] %v2413
        %2459 = vst [vmem:[%s190 + $0x7c] sm:$0xf] %v2414
        %2460 = vst [vmem:[%s190 + $0x80] sm:$0xf] %v2415
        %2461 = vst [vmem:[%s190 + $0x84] sm:$0xf] %v2416
        %2462 = vst [vmem:[%s190 + $0x88] sm:$0xf] %v2417
        %2463 = vst [vmem:[%s190 + $0x8c] sm:$0xf] %v2418
        %2464 = vst [vmem:[%s190 + $0x90] sm:$0xf] %v2419
        %2465 = vst [vmem:[%s190 + $0x94] sm:$0xf] %v2420
        %2466 = vst [vmem:[%s190 + $0x98] sm:$0xf] %v2421
        %2467 = vst [vmem:[%s190 + $0x9c] sm:$0xf] %v2422
        %2468 = vst [vmem:[%s190 + $0xa0] sm:$0xf] %v2423
        %2469 = vst [vmem:[%s190 + $0xa4] sm:$0xf] %v2424
        %2470 = vst [vmem:[%s190 + $0xa8] sm:$0xf] %v2425
        %2471 = vst [vmem:[%s190 + $0xac] sm:$0xf] %v2426
        %2472 = vst [vmem:[%s190 + $0xb0] sm:$0xf] %v2427
        %s2473 = sand.u32 %s115, 1
        %s2474 = scalar_lea.sflag [#allocation3], %s2473
        %s2475 = sand.u32 %s115, 1
        %s2476 = smul.addr %s2475, 180
        %s2477 = scalar_lea.vmem [#allocation2], %s2476
        // Predicated region
        $region37: #{_fused_stage.1} parent=35 // pred_check
          %p2478 = pneg %p125
        $region38: #{_fused_stage.1} parent=35 // pred_check_branch
          %2480 = sbr.rel (%p2478) target = $region40
        $region39: #{_fused_stage.1} parent=35 // pred_region
          %2482 = vsyncadd %s2474, 0
          %s2483 = smul.addr %s18, 45
          %s2484 = smul.addr %s2483, 4
          %s2485 = scalar_lea.hbm %s4, %s2484
          %s2486 = sshll.u32 %s2477, 4
          %s2487 = int_to_ptr.vmem [resolvable:$true] %s2486
          %s2488 = sshll.u32 %s2485, 4
          %s2489 = int_to_ptr.hbm [resolvable:$true] %s2488
          %2494 = dma.vmem_to_hbm [thread:$0]  %s2487, 2880, %s2489, %s2474, 64, 64, 4
        $region40: #{_fused_stage.1} parent=35 // pred_fallthru
          _
      $region36: #{_fused_stage.1} parent=5 // pred_fallthru
        _
      %p2495 = scmp.le.s32.totalorder 2, %s13
      // Predicated region
      $region41: #{_fused_stage.1} parent=5 // pred_check
        %p2496 = pneg %p2495
      $region42: #{_fused_stage.1} parent=5 // pred_check_branch
        %2498 = sbr.rel (%p2496) target = $region44
      $region43: #{_fused_stage.1} parent=5 // pred_region
        %s2499 = ssub.s32 %s13, 2
        // Predicated region
        $region45: #{_fused_stage.1} parent=43 // pred_check
          %p2500 = pneg %p131
        $region46: #{_fused_stage.1} parent=43 // pred_check_branch
          %2502 = sbr.rel (%p2500) target = $region48
        $region47: #{_fused_stage.1} parent=43 // pred_region
          %s2503 = sand.u32 %s116, 1
          %s2504 = scalar_lea.sflag [#allocation3], %s2503
          %s2505 = sand.u32 %s116, 1
          %s2506 = smul.addr %s2505, 180
          %s2507 = scalar_lea.vmem [#allocation2], %s2506
          %2509 = dma.done %s2504, 2880
        $region48: #{_fused_stage.1} parent=43 // pred_fallthru
          _
      $region44: #{_fused_stage.1} parent=5 // pred_fallthru
        _
    $region6: #{_fused_stage.1} parent=1 // loop_footer
      %s17 = sadd.s32 1, %s13
    $region7: #{_fused_stage.1} parent=1 // loop_footer_branch
      %12 = sbr.rel target = $region3
    $region8: #{_fused_stage.1} parent=1 // loop_exit
      _
    %2510 = vsyncpa [#allocation3], 1
    %s2511 = scalar_lea.sflag [#allocation3], 1
    %2512 = vsyncpa %s2511, 1

</llo_original>
